<compile_context>
chip_gen: v6e
topology: v6e:2x2x1
jax: 0.10.0
libtpu: 0.0.40
codegen_flags: <defaults>
</compile_context>

<pallas_src>
import jax
import jax.numpy as jnp
from jax import lax
from jax.experimental import pallas as pl
from jax.experimental.pallas import tpu as pltpu


# -----------------------------------------------------------------------------
# Kernel builder: num_layers / T / TB / H_pad are static.
# -----------------------------------------------------------------------------
def _make_stock_rnn_kernel(num_layers, T, TB, H_pad, hoist_weights,
                           compute_dtype):
    n_seq = 1 if num_layers == 1 else 2

    def kernel(*refs):
        x_ref = refs[0]                          # (T*TB, D)   time-major tile
        layer_refs = refs[1:1 + 3 * num_layers]  # per layer: W_ih^T, W_hh^T, b
        wfc_ref = refs[1 + 3 * num_layers]       # (H_pad, O_pad)
        bfc_ref = refs[2 + 3 * num_layers]       # (1, O_pad)
        out_ref = refs[3 + 3 * num_layers]       # (TB, O_pad)
        seq_refs = refs[4 + 3 * num_layers:
                        4 + 3 * num_layers + n_seq]  # (T*TB, H_pad) scratch

        h = None
        for l in range(num_layers):
            wih_ref = layer_refs[3 * l]
            whh_ref = layer_refs[3 * l + 1]
            b = layer_refs[3 * l + 2][...].astype(jnp.float32)  # (1, H_pad)
            last = l == num_layers - 1

            # Ping-pong buffers: read previous layer from one buffer, write
            # this layer's pre-activations into the other.
            cur = seq_refs[l % n_seq]
            prev = x_ref if l == 0 else seq_refs[(l - 1) % n_seq]

            # Only hoist whole-weight loads for small H_pad (vreg pressure);
            # otherwise let the matmuls stream operands from VMEM.
            if hoist_weights:
                wih_val = wih_ref[...]
                whh_val = whh_ref[...]
            else:
                wih_val = None
                whh_val = None

            # Feed-forward part for the whole sequence: one big MXU matmul.
            inp = prev[...].astype(compute_dtype)
            cur[...] = (
                jnp.dot(inp, wih_val if hoist_weights else wih_ref[...],
                        preferred_element_type=jnp.float32) + b)

            # Serial recurrence: only h @ W_hh^T is on the dependency chain;
            # h stays in vregs (no per-step VMEM round-trip for the carry).
            def step(t, h_c, whh_ref=whh_ref, whh_val=whh_val,
                     cur=cur, last=last):
                row = pl.multiple_of(t * TB, 8)
                rhs = whh_val if hoist_weights else whh_ref[...]
                pre = cur[pl.ds(row, TB), :]
                h_n = jnp.tanh(
                    pre + jnp.dot(h_c.astype(compute_dtype), rhs,
                                  preferred_element_type=jnp.float32))
                if not last:
                    cur[pl.ds(row, TB), :] = h_n
                return h_n

            h = lax.fori_loop(0, T, step,
                              jnp.zeros((TB, H_pad), jnp.float32),
                              unroll=min(8, T))

        # Final Linear on the last timestep's hidden state (lane-dense store).
        out_ref[...] = (jnp.dot(h.astype(compute_dtype), wfc_ref[...],
                                preferred_element_type=jnp.float32)
                        + bfc_ref[...].astype(jnp.float32)
                        ).astype(out_ref.dtype)

    return kernel


def _round_up(n, m):
    return ((n + m - 1) // m) * m


def _tpu_vmem_and_cores():
    """Best-effort (VMEM capacity per core, TensorCores per chip)."""
    cap = None
    try:
        cap = int(pltpu.get_tpu_info().vmem_capacity_bytes)
    except Exception:
        cap = None
    if cap is None:
        return 64 << 20, 1            # conservative fallback
    num_tc = 2 if cap <= (64 << 20) else 1   # 64 MiB/TC parts are megacore
    return cap, num_tc


# -----------------------------------------------------------------------------
# Wrapper: shape plumbing (pad / transpose / bias folding) + one pallas_call.
# -----------------------------------------------------------------------------
def stock_rnn_forward(x, params, *, batch_tile=None, use_bf16=False):
    (wih0, whh0, bih0, bhh0,
     wih_rest, whh_rest, bih_rest, bhh_rest,
     wfc, bfc) = params

    B, T, D = x.shape
    H = whh0.shape[0]
    O = wfc.shape[0]
    L = 1 + wih_rest.shape[0]

    B_pad = _round_up(B, 8)        # sublane-friendly batch
    H_pad = _round_up(H, 128)      # lane-friendly hidden
    O_pad = _round_up(O, 128)      # lane-dense output store

    vmem_cap, num_tc = _tpu_vmem_and_cores()

    # Batch tile: one big tile on single-TC chips (v5e/v6e); 2-way split on
    # megacore (v7x) so the "parallel" grid axis feeds both TensorCores.
    if batch_tile is None:
        if num_tc >= 2 and B_pad % 16 == 0:
            TB = B_pad // 2
        else:
            TB = B_pad
    else:
        TB = batch_tile
    assert TB % 8 == 0 and B_pad % TB == 0
    nb = B_pad // TB

    f32 = jnp.float32
    wdt = jnp.bfloat16 if use_bf16 else f32   # weight / matmul-LHS dtype

    # Batch-tiled, time-major, flattened input: (nb, T*TB, D); row = t*TB + i.
    xp = jnp.zeros((B_pad, T, D), f32).at[:B].set(x.astype(f32))
    xp = (xp.reshape(nb, TB, T, D)
            .transpose(0, 2, 1, 3)
            .reshape(nb, T * TB, D))

    def _pad2(w, r, c, dtype):
        return jnp.zeros((r, c), dtype).at[:w.shape[0], :w.shape[1]].set(
            w.astype(dtype))

    # Per-layer weights: transpose so every matmul is (rows, K) @ (K, H_pad),
    # zero-pad to the padded hidden size, fold the two biases into one (f32).
    layer_args = []
    for l in range(L):
        if l == 0:
            wih, whh, bih, bhh = wih0, whh0, bih0, bhh0
            k_pad = D
        else:
            wih, whh = wih_rest[l - 1], whh_rest[l - 1]
            bih, bhh = bih_rest[l - 1], bhh_rest[l - 1]
            k_pad = H_pad
        layer_args.append(_pad2(wih.T, k_pad, H_pad, wdt))
        layer_args.append(_pad2(whh.T, H_pad, H_pad, wdt))
        layer_args.append(_pad2((bih + bhh).reshape(1, H), 1, H_pad, f32))
    wfc_t = _pad2(wfc.T, H_pad, O_pad, wdt)
    bfc_p = _pad2(bfc.reshape(1, O), 1, O_pad, f32)

    def _nbytes(a):
        return int(a.size) * jnp.dtype(a.dtype).itemsize

    weight_bytes = (sum(_nbytes(a) for a in layer_args)
                    + _nbytes(wfc_t) + _nbytes(bfc_p))
    n_seq = 1 if L == 1 else 2

    # VMEM budget: double-buffered x/out tiles, ping-pong seq scratch, and
    # resident weights counted 2x (buffering slack on the whole-array specs).
    vmem_bytes = 4 * (2 * T * TB * D
                      + 2 * TB * O_pad
                      + n_seq * T * TB * H_pad) + 2 * weight_bytes
    cap_limit = min(int(0.82 * vmem_cap), 112 << 20)  # ~105 MiB v5e/v6e, ~52 MiB/TC v7x
    vmem_limit = min(max(vmem_bytes + (4 << 20), 16 << 20), cap_limit)

    # Advisory cost estimate so XLA can schedule/overlap around the call.
    flops = 0
    k = D
    for _ in range(L):
        flops += 2 * T * B_pad * H_pad * (k + H_pad)
        k = H_pad
    flops += 2 * B_pad * H_pad * O_pad
    cost = pl.CostEstimate(
        flops=int(flops),
        transcendentals=int(L * T * B_pad * H_pad),
        bytes_accessed=int(_nbytes(xp) + weight_bytes + 4 * B_pad * O_pad))

    vmem_full = pl.BlockSpec(memory_space=pltpu.MemorySpace.VMEM)
    hoist_weights = H_pad <= 128
    kernel = _make_stock_rnn_kernel(L, T, TB, H_pad, hoist_weights, wdt)

    out = pl.pallas_call(
        kernel,
        out_shape=jax.ShapeDtypeStruct((B_pad, O_pad), f32),
        grid=(nb,),
        in_specs=[pl.BlockSpec((None, T * TB, D), lambda b: (b, 0, 0))]
                 + [vmem_full] * (3 * L + 2),
        out_specs=pl.BlockSpec((TB, O_pad), lambda b: (b, 0)),
        scratch_shapes=[pltpu.VMEM((T * TB, H_pad), f32)
                        for _ in range(n_seq)],
        compiler_params=pltpu.CompilerParams(
            dimension_semantics=("parallel",),
            vmem_limit_bytes=vmem_limit),
        cost_estimate=cost,
    )(xp, *layer_args, wfc_t, bfc_p)

    return out[:B, :O]


# -----------------------------------------------------------------------------
# Pure-JAX reference (mirrors torch nn.RNN + nn.Linear semantics exactly).
# -----------------------------------------------------------------------------
def stock_rnn_reference(x, params):
    (wih0, whh0, bih0, bhh0,
     wih_rest, whh_rest, bih_rest, bhh_rest,
     wfc, bfc) = params
    B, T, _ = x.shape
    H = whh0.shape[0]
    L = 1 + wih_rest.shape[0]

    layer_in = x
    for l in range(L):
        if l == 0:
            wih, whh, bih, bhh = wih0, whh0, bih0, bhh0
        else:
            wih, whh = wih_rest[l - 1], whh_rest[l - 1]
            bih, bhh = bih_rest[l - 1], bhh_rest[l - 1]
        h = jnp.zeros((B, H), jnp.float32)
        hs = []
        for t in range(T):
            h = jnp.tanh(layer_in[:, t, :] @ wih.T + bih + h @ whh.T + bhh)
            hs.append(h)
        layer_in = jnp.stack(hs, axis=1)
    return layer_in[:, -1, :] @ wfc.T + bfc


# -----------------------------------------------------------------------------
# Deterministic parameter init (PyTorch-style uniform(-1/sqrt(H), 1/sqrt(H))).
# -----------------------------------------------------------------------------
def init_params(key, input_size, hidden_size, num_layers, output_size):
    k_rnn = 1.0 / jnp.sqrt(hidden_size)
    k_fc = 1.0 / jnp.sqrt(hidden_size)
    keys = jax.random.split(key, 10)

    def u(k, shape, bound):
        return jax.random.uniform(k, shape, jnp.float32, -bound, bound)

    wih0 = u(keys[0], (hidden_size, input_size), k_rnn)
    whh0 = u(keys[1], (hidden_size, hidden_size), k_rnn)
    bih0 = u(keys[2], (hidden_size,), k_rnn)
    bhh0 = u(keys[3], (hidden_size,), k_rnn)
    wih_rest = u(keys[4], (num_layers - 1, hidden_size, hidden_size), k_rnn)
    whh_rest = u(keys[5], (num_layers - 1, hidden_size, hidden_size), k_rnn)
    bih_rest = u(keys[6], (num_layers - 1, hidden_size), k_rnn)
    bhh_rest = u(keys[7], (num_layers - 1, hidden_size), k_rnn)
    wfc = u(keys[8], (output_size, hidden_size), k_fc)
    bfc = u(keys[9], (output_size,), k_fc)
    return (wih0, whh0, bih0, bhh0,
            wih_rest, whh_rest, bih_rest, bhh_rest,
            wfc, bfc)


if __name__ == "__main__":
    # Small shapes implied by the module: (batch, seq_len, input_size)
    B, T, D = 2, 8, 4
    H, L, O = 32, 2, 1

    key = jax.random.PRNGKey(0)
    kx, kp = jax.random.split(key)
    x = jax.random.normal(kx, (B, T, D), jnp.float32)
    params = init_params(kp, D, H, L, O)

    out = jax.block_until_ready(stock_rnn_forward(x, params))
    ref = stock_rnn_reference(x, params)
    assert out.shape == (B, O), out.shape
    assert jnp.allclose(out, ref, atol=1e-5, rtol=1e-5), (out, ref)
    print("KERNEL_OK")
</pallas_src>

<mosaic_0001>
module attributes {stable_mosaic.version = 11 : i64} {
  func.func @kernel(%arg0: i32, %arg1: memref<1x64x4xf32, #tpu.memory_space<vmem>>, %arg2: memref<4x128xf32, #tpu.memory_space<vmem>>, %arg3: memref<128x128xf32, #tpu.memory_space<vmem>>, %arg4: memref<1x128xf32, #tpu.memory_space<vmem>>, %arg5: memref<128x128xf32, #tpu.memory_space<vmem>>, %arg6: memref<128x128xf32, #tpu.memory_space<vmem>>, %arg7: memref<1x128xf32, #tpu.memory_space<vmem>>, %arg8: memref<128x128xf32, #tpu.memory_space<vmem>>, %arg9: memref<1x128xf32, #tpu.memory_space<vmem>>, %arg10: memref<8x128xf32, #tpu.memory_space<vmem>>, %arg11: memref<64x128xf32, #tpu.memory_space<vmem>>, %arg12: memref<64x128xf32, #tpu.memory_space<vmem>>) attributes {dimension_semantics = [#tpu.dimension_semantics<parallel>], iteration_bounds = array<i64: 1>, scalar_prefetch = 0 : i64, scratch_operands = 2 : i64, tpu.core_type = #tpu.core_type<tc>, window_params = [{transform_indices = @transform_0, window_bounds = array<i64: 1, 64, 4>}, {pipeline_mode = #tpu.pipeline_mode<synchronous>, transform_indices = @transform_1, window_bounds = array<i64: 4, 128>}, {pipeline_mode = #tpu.pipeline_mode<synchronous>, transform_indices = @transform_2, window_bounds = array<i64: 128, 128>}, {pipeline_mode = #tpu.pipeline_mode<synchronous>, transform_indices = @transform_3, window_bounds = array<i64: 1, 128>}, {pipeline_mode = #tpu.pipeline_mode<synchronous>, transform_indices = @transform_4, window_bounds = array<i64: 128, 128>}, {pipeline_mode = #tpu.pipeline_mode<synchronous>, transform_indices = @transform_5, window_bounds = array<i64: 128, 128>}, {pipeline_mode = #tpu.pipeline_mode<synchronous>, transform_indices = @transform_6, window_bounds = array<i64: 1, 128>}, {pipeline_mode = #tpu.pipeline_mode<synchronous>, transform_indices = @transform_7, window_bounds = array<i64: 128, 128>}, {pipeline_mode = #tpu.pipeline_mode<synchronous>, transform_indices = @transform_8, window_bounds = array<i64: 1, 128>}, {transform_indices = @transform_9, window_bounds = array<i64: 8, 128>}]} {
    %c0 = arith.constant 0 : index
    %c0_0 = arith.constant 0 : index
    %0 = vector.load %arg4[%c0, %c0_0] : memref<1x128xf32, #tpu.memory_space<vmem>>, vector<1x128xf32>
    %c0_1 = arith.constant 0 : index
    %c0_2 = arith.constant 0 : index
    %1 = vector.load %arg2[%c0_1, %c0_2] : memref<4x128xf32, #tpu.memory_space<vmem>>, vector<4x128xf32>
    %c0_3 = arith.constant 0 : index
    %c0_4 = arith.constant 0 : index
    %2 = vector.load %arg3[%c0_3, %c0_4] : memref<128x128xf32, #tpu.memory_space<vmem>>, vector<128x128xf32>
    %c0_5 = arith.constant 0 : index
    %c0_6 = arith.constant 0 : index
    %c0_7 = arith.constant 0 : index
    %3 = vector.load %arg1[%c0_5, %c0_6, %c0_7] : memref<1x64x4xf32, #tpu.memory_space<vmem>>, vector<1x64x4xf32>
    %4 = vector.shape_cast %3 : vector<1x64x4xf32> to vector<64x4xf32>
    %cst = arith.constant dense<0.000000e+00> : vector<64x128xf32>
    %5 = tpu.matmul %4, %1, %cst {dimension_numbers = #tpu.dot_dimension_numbers<[1], [0], [0], [1], [0, 0, 1, 1], [], []>} : vector<64x4xf32>, vector<4x128xf32>, vector<64x128xf32> -> vector<64x128xf32>
    %6 = vector.broadcast %0 : vector<1x128xf32> to vector<64x128xf32>
    %7 = arith.addf %5, %6 : vector<64x128xf32>
    %c0_8 = arith.constant 0 : index
    %c0_9 = arith.constant 0 : index
    %8 = vector.load %arg11[%c0_8, %c0_9] : memref<64x128xf32, #tpu.memory_space<vmem>>, vector<64x128xf32>
    tpu.vector_store %arg11[%c0_8, %c0_9], %7 {strides = array<i32>} : memref<64x128xf32, #tpu.memory_space<vmem>>, vector<64x128xf32>,
    %cst_10 = arith.constant 0.000000e+00 : f32
    %9 = vector.broadcast %cst_10 : f32 to vector<8x128xf32>
    %c0_i32 = arith.constant 0 : i32
    %c8_i32 = arith.constant 8 : i32
    %10 = arith.muli %c0_i32, %c8_i32 : i32
    %11 = tpu.assume_multiple %10, 8 : i32
    %12 = arith.index_cast %11 : i32 to index
    %c0_11 = arith.constant 0 : index
    %13 = vector.load %arg11[%12, %c0_11] : memref<64x128xf32, #tpu.memory_space<vmem>>, vector<8x128xf32>
    %cst_12 = arith.constant dense<0.000000e+00> : vector<8x128xf32>
    %14 = tpu.matmul %9, %2, %cst_12 {dimension_numbers = #tpu.dot_dimension_numbers<[1], [0], [0], [1], [0, 0, 1, 1], [], []>} : vector<8x128xf32>, vector<128x128xf32>, vector<8x128xf32> -> vector<8x128xf32>
    %15 = arith.addf %13, %14 : vector<8x128xf32>
    %16 = math.tanh %15 : vector<8x128xf32>
    %17 = arith.index_cast %11 : i32 to index
    %c0_13 = arith.constant 0 : index
    %18 = vector.load %arg11[%17, %c0_13] : memref<64x128xf32, #tpu.memory_space<vmem>>, vector<8x128xf32>
    tpu.vector_store %arg11[%17, %c0_13], %16 {strides = array<i32>} : memref<64x128xf32, #tpu.memory_space<vmem>>, vector<8x128xf32>,
    %c1_i32 = arith.constant 1 : i32
    %c8_i32_14 = arith.constant 8 : i32
    %19 = arith.muli %c1_i32, %c8_i32_14 : i32
    %20 = tpu.assume_multiple %19, 8 : i32
    %21 = arith.index_cast %20 : i32 to index
    %c0_15 = arith.constant 0 : index
    %22 = vector.load %arg11[%21, %c0_15] : memref<64x128xf32, #tpu.memory_space<vmem>>, vector<8x128xf32>
    %cst_16 = arith.constant dense<0.000000e+00> : vector<8x128xf32>
    %23 = tpu.matmul %16, %2, %cst_16 {dimension_numbers = #tpu.dot_dimension_numbers<[1], [0], [0], [1], [0, 0, 1, 1], [], []>} : vector<8x128xf32>, vector<128x128xf32>, vector<8x128xf32> -> vector<8x128xf32>
    %24 = arith.addf %22, %23 : vector<8x128xf32>
    %25 = math.tanh %24 : vector<8x128xf32>
    %26 = arith.index_cast %20 : i32 to index
    %c0_17 = arith.constant 0 : index
    %27 = vector.load %arg11[%26, %c0_17] : memref<64x128xf32, #tpu.memory_space<vmem>>, vector<8x128xf32>
    tpu.vector_store %arg11[%26, %c0_17], %25 {strides = array<i32>} : memref<64x128xf32, #tpu.memory_space<vmem>>, vector<8x128xf32>,
    %c2_i32 = arith.constant 2 : i32
    %c8_i32_18 = arith.constant 8 : i32
    %28 = arith.muli %c2_i32, %c8_i32_18 : i32
    %29 = tpu.assume_multiple %28, 8 : i32
    %30 = arith.index_cast %29 : i32 to index
    %c0_19 = arith.constant 0 : index
    %31 = vector.load %arg11[%30, %c0_19] : memref<64x128xf32, #tpu.memory_space<vmem>>, vector<8x128xf32>
    %cst_20 = arith.constant dense<0.000000e+00> : vector<8x128xf32>
    %32 = tpu.matmul %25, %2, %cst_20 {dimension_numbers = #tpu.dot_dimension_numbers<[1], [0], [0], [1], [0, 0, 1, 1], [], []>} : vector<8x128xf32>, vector<128x128xf32>, vector<8x128xf32> -> vector<8x128xf32>
    %33 = arith.addf %31, %32 : vector<8x128xf32>
    %34 = math.tanh %33 : vector<8x128xf32>
    %35 = arith.index_cast %29 : i32 to index
    %c0_21 = arith.constant 0 : index
    %36 = vector.load %arg11[%35, %c0_21] : memref<64x128xf32, #tpu.memory_space<vmem>>, vector<8x128xf32>
    tpu.vector_store %arg11[%35, %c0_21], %34 {strides = array<i32>} : memref<64x128xf32, #tpu.memory_space<vmem>>, vector<8x128xf32>,
    %c3_i32 = arith.constant 3 : i32
    %c8_i32_22 = arith.constant 8 : i32
    %37 = arith.muli %c3_i32, %c8_i32_22 : i32
    %38 = tpu.assume_multiple %37, 8 : i32
    %39 = arith.index_cast %38 : i32 to index
    %c0_23 = arith.constant 0 : index
    %40 = vector.load %arg11[%39, %c0_23] : memref<64x128xf32, #tpu.memory_space<vmem>>, vector<8x128xf32>
    %cst_24 = arith.constant dense<0.000000e+00> : vector<8x128xf32>
    %41 = tpu.matmul %34, %2, %cst_24 {dimension_numbers = #tpu.dot_dimension_numbers<[1], [0], [0], [1], [0, 0, 1, 1], [], []>} : vector<8x128xf32>, vector<128x128xf32>, vector<8x128xf32> -> vector<8x128xf32>
    %42 = arith.addf %40, %41 : vector<8x128xf32>
    %43 = math.tanh %42 : vector<8x128xf32>
    %44 = arith.index_cast %38 : i32 to index
    %c0_25 = arith.constant 0 : index
    %45 = vector.load %arg11[%44, %c0_25] : memref<64x128xf32, #tpu.memory_space<vmem>>, vector<8x128xf32>
    tpu.vector_store %arg11[%44, %c0_25], %43 {strides = array<i32>} : memref<64x128xf32, #tpu.memory_space<vmem>>, vector<8x128xf32>,
    %c4_i32 = arith.constant 4 : i32
    %c8_i32_26 = arith.constant 8 : i32
    %46 = arith.muli %c4_i32, %c8_i32_26 : i32
    %47 = tpu.assume_multiple %46, 8 : i32
    %48 = arith.index_cast %47 : i32 to index
    %c0_27 = arith.constant 0 : index
    %49 = vector.load %arg11[%48, %c0_27] : memref<64x128xf32, #tpu.memory_space<vmem>>, vector<8x128xf32>
    %cst_28 = arith.constant dense<0.000000e+00> : vector<8x128xf32>
    %50 = tpu.matmul %43, %2, %cst_28 {dimension_numbers = #tpu.dot_dimension_numbers<[1], [0], [0], [1], [0, 0, 1, 1], [], []>} : vector<8x128xf32>, vector<128x128xf32>, vector<8x128xf32> -> vector<8x128xf32>
    %51 = arith.addf %49, %50 : vector<8x128xf32>
    %52 = math.tanh %51 : vector<8x128xf32>
    %53 = arith.index_cast %47 : i32 to index
    %c0_29 = arith.constant 0 : index
    %54 = vector.load %arg11[%53, %c0_29] : memref<64x128xf32, #tpu.memory_space<vmem>>, vector<8x128xf32>
    tpu.vector_store %arg11[%53, %c0_29], %52 {strides = array<i32>} : memref<64x128xf32, #tpu.memory_space<vmem>>, vector<8x128xf32>,
    %c5_i32 = arith.constant 5 : i32
    %c8_i32_30 = arith.constant 8 : i32
    %55 = arith.muli %c5_i32, %c8_i32_30 : i32
    %56 = tpu.assume_multiple %55, 8 : i32
    %57 = arith.index_cast %56 : i32 to index
    %c0_31 = arith.constant 0 : index
    %58 = vector.load %arg11[%57, %c0_31] : memref<64x128xf32, #tpu.memory_space<vmem>>, vector<8x128xf32>
    %cst_32 = arith.constant dense<0.000000e+00> : vector<8x128xf32>
    %59 = tpu.matmul %52, %2, %cst_32 {dimension_numbers = #tpu.dot_dimension_numbers<[1], [0], [0], [1], [0, 0, 1, 1], [], []>} : vector<8x128xf32>, vector<128x128xf32>, vector<8x128xf32> -> vector<8x128xf32>
    %60 = arith.addf %58, %59 : vector<8x128xf32>
    %61 = math.tanh %60 : vector<8x128xf32>
    %62 = arith.index_cast %56 : i32 to index
    %c0_33 = arith.constant 0 : index
    %63 = vector.load %arg11[%62, %c0_33] : memref<64x128xf32, #tpu.memory_space<vmem>>, vector<8x128xf32>
    tpu.vector_store %arg11[%62, %c0_33], %61 {strides = array<i32>} : memref<64x128xf32, #tpu.memory_space<vmem>>, vector<8x128xf32>,
    %c6_i32 = arith.constant 6 : i32
    %c8_i32_34 = arith.constant 8 : i32
    %64 = arith.muli %c6_i32, %c8_i32_34 : i32
    %65 = tpu.assume_multiple %64, 8 : i32
    %66 = arith.index_cast %65 : i32 to index
    %c0_35 = arith.constant 0 : index
    %67 = vector.load %arg11[%66, %c0_35] : memref<64x128xf32, #tpu.memory_space<vmem>>, vector<8x128xf32>
    %cst_36 = arith.constant dense<0.000000e+00> : vector<8x128xf32>
    %68 = tpu.matmul %61, %2, %cst_36 {dimension_numbers = #tpu.dot_dimension_numbers<[1], [0], [0], [1], [0, 0, 1, 1], [], []>} : vector<8x128xf32>, vector<128x128xf32>, vector<8x128xf32> -> vector<8x128xf32>
    %69 = arith.addf %67, %68 : vector<8x128xf32>
    %70 = math.tanh %69 : vector<8x128xf32>
    %71 = arith.index_cast %65 : i32 to index
    %c0_37 = arith.constant 0 : index
    %72 = vector.load %arg11[%71, %c0_37] : memref<64x128xf32, #tpu.memory_space<vmem>>, vector<8x128xf32>
    tpu.vector_store %arg11[%71, %c0_37], %70 {strides = array<i32>} : memref<64x128xf32, #tpu.memory_space<vmem>>, vector<8x128xf32>,
    %c7_i32 = arith.constant 7 : i32
    %c8_i32_38 = arith.constant 8 : i32
    %73 = arith.muli %c7_i32, %c8_i32_38 : i32
    %74 = tpu.assume_multiple %73, 8 : i32
    %75 = arith.index_cast %74 : i32 to index
    %c0_39 = arith.constant 0 : index
    %76 = vector.load %arg11[%75, %c0_39] : memref<64x128xf32, #tpu.memory_space<vmem>>, vector<8x128xf32>
    %cst_40 = arith.constant dense<0.000000e+00> : vector<8x128xf32>
    %77 = tpu.matmul %70, %2, %cst_40 {dimension_numbers = #tpu.dot_dimension_numbers<[1], [0], [0], [1], [0, 0, 1, 1], [], []>} : vector<8x128xf32>, vector<128x128xf32>, vector<8x128xf32> -> vector<8x128xf32>
    %78 = arith.addf %76, %77 : vector<8x128xf32>
    %79 = math.tanh %78 : vector<8x128xf32>
    %80 = arith.index_cast %74 : i32 to index
    %c0_41 = arith.constant 0 : index
    %81 = vector.load %arg11[%80, %c0_41] : memref<64x128xf32, #tpu.memory_space<vmem>>, vector<8x128xf32>
    tpu.vector_store %arg11[%80, %c0_41], %79 {strides = array<i32>} : memref<64x128xf32, #tpu.memory_space<vmem>>, vector<8x128xf32>,
    %c8_i32_42 = arith.constant 8 : i32
    %c0_43 = arith.constant 0 : index
    %c0_44 = arith.constant 0 : index
    %82 = vector.load %arg7[%c0_43, %c0_44] : memref<1x128xf32, #tpu.memory_space<vmem>>, vector<1x128xf32>
    %c0_45 = arith.constant 0 : index
    %c0_46 = arith.constant 0 : index
    %83 = vector.load %arg5[%c0_45, %c0_46] : memref<128x128xf32, #tpu.memory_space<vmem>>, vector<128x128xf32>
    %c0_47 = arith.constant 0 : index
    %c0_48 = arith.constant 0 : index
    %84 = vector.load %arg6[%c0_47, %c0_48] : memref<128x128xf32, #tpu.memory_space<vmem>>, vector<128x128xf32>
    %c0_49 = arith.constant 0 : index
    %c0_50 = arith.constant 0 : index
    %85 = vector.load %arg11[%c0_49, %c0_50] : memref<64x128xf32, #tpu.memory_space<vmem>>, vector<64x128xf32>
    %cst_51 = arith.constant dense<0.000000e+00> : vector<64x128xf32>
    %86 = tpu.matmul %85, %83, %cst_51 {dimension_numbers = #tpu.dot_dimension_numbers<[1], [0], [0], [1], [0, 0, 1, 1], [], []>} : vector<64x128xf32>, vector<128x128xf32>, vector<64x128xf32> -> vector<64x128xf32>
    %87 = vector.broadcast %82 : vector<1x128xf32> to vector<64x128xf32>
    %88 = arith.addf %86, %87 : vector<64x128xf32>
    %c0_52 = arith.constant 0 : index
    %c0_53 = arith.constant 0 : index
    %89 = vector.load %arg12[%c0_52, %c0_53] : memref<64x128xf32, #tpu.memory_space<vmem>>, vector<64x128xf32>
    tpu.vector_store %arg12[%c0_52, %c0_53], %88 {strides = array<i32>} : memref<64x128xf32, #tpu.memory_space<vmem>>, vector<64x128xf32>,
    %cst_54 = arith.constant 0.000000e+00 : f32
    %90 = vector.broadcast %cst_54 : f32 to vector<8x128xf32>
    %c0_i32_55 = arith.constant 0 : i32
    %c8_i32_56 = arith.constant 8 : i32
    %91 = arith.muli %c0_i32_55, %c8_i32_56 : i32
    %92 = tpu.assume_multiple %91, 8 : i32
    %93 = arith.index_cast %92 : i32 to index
    %c0_57 = arith.constant 0 : index
    %94 = vector.load %arg12[%93, %c0_57] : memref<64x128xf32, #tpu.memory_space<vmem>>, vector<8x128xf32>
    %cst_58 = arith.constant dense<0.000000e+00> : vector<8x128xf32>
    %95 = tpu.matmul %90, %84, %cst_58 {dimension_numbers = #tpu.dot_dimension_numbers<[1], [0], [0], [1], [0, 0, 1, 1], [], []>} : vector<8x128xf32>, vector<128x128xf32>, vector<8x128xf32> -> vector<8x128xf32>
    %96 = arith.addf %94, %95 : vector<8x128xf32>
    %97 = math.tanh %96 : vector<8x128xf32>
    %c1_i32_59 = arith.constant 1 : i32
    %c8_i32_60 = arith.constant 8 : i32
    %98 = arith.muli %c1_i32_59, %c8_i32_60 : i32
    %99 = tpu.assume_multiple %98, 8 : i32
    %100 = arith.index_cast %99 : i32 to index
    %c0_61 = arith.constant 0 : index
    %101 = vector.load %arg12[%100, %c0_61] : memref<64x128xf32, #tpu.memory_space<vmem>>, vector<8x128xf32>
    %cst_62 = arith.constant dense<0.000000e+00> : vector<8x128xf32>
    %102 = tpu.matmul %97, %84, %cst_62 {dimension_numbers = #tpu.dot_dimension_numbers<[1], [0], [0], [1], [0, 0, 1, 1], [], []>} : vector<8x128xf32>, vector<128x128xf32>, vector<8x128xf32> -> vector<8x128xf32>
    %103 = arith.addf %101, %102 : vector<8x128xf32>
    %104 = math.tanh %103 : vector<8x128xf32>
    %c2_i32_63 = arith.constant 2 : i32
    %c8_i32_64 = arith.constant 8 : i32
    %105 = arith.muli %c2_i32_63, %c8_i32_64 : i32
    %106 = tpu.assume_multiple %105, 8 : i32
    %107 = arith.index_cast %106 : i32 to index
    %c0_65 = arith.constant 0 : index
    %108 = vector.load %arg12[%107, %c0_65] : memref<64x128xf32, #tpu.memory_space<vmem>>, vector<8x128xf32>
    %cst_66 = arith.constant dense<0.000000e+00> : vector<8x128xf32>
    %109 = tpu.matmul %104, %84, %cst_66 {dimension_numbers = #tpu.dot_dimension_numbers<[1], [0], [0], [1], [0, 0, 1, 1], [], []>} : vector<8x128xf32>, vector<128x128xf32>, vector<8x128xf32> -> vector<8x128xf32>
    %110 = arith.addf %108, %109 : vector<8x128xf32>
    %111 = math.tanh %110 : vector<8x128xf32>
    %c3_i32_67 = arith.constant 3 : i32
    %c8_i32_68 = arith.constant 8 : i32
    %112 = arith.muli %c3_i32_67, %c8_i32_68 : i32
    %113 = tpu.assume_multiple %112, 8 : i32
    %114 = arith.index_cast %113 : i32 to index
    %c0_69 = arith.constant 0 : index
    %115 = vector.load %arg12[%114, %c0_69] : memref<64x128xf32, #tpu.memory_space<vmem>>, vector<8x128xf32>
    %cst_70 = arith.constant dense<0.000000e+00> : vector<8x128xf32>
    %116 = tpu.matmul %111, %84, %cst_70 {dimension_numbers = #tpu.dot_dimension_numbers<[1], [0], [0], [1], [0, 0, 1, 1], [], []>} : vector<8x128xf32>, vector<128x128xf32>, vector<8x128xf32> -> vector<8x128xf32>
    %117 = arith.addf %115, %116 : vector<8x128xf32>
    %118 = math.tanh %117 : vector<8x128xf32>
    %c4_i32_71 = arith.constant 4 : i32
    %c8_i32_72 = arith.constant 8 : i32
    %119 = arith.muli %c4_i32_71, %c8_i32_72 : i32
    %120 = tpu.assume_multiple %119, 8 : i32
    %121 = arith.index_cast %120 : i32 to index
    %c0_73 = arith.constant 0 : index
    %122 = vector.load %arg12[%121, %c0_73] : memref<64x128xf32, #tpu.memory_space<vmem>>, vector<8x128xf32>
    %cst_74 = arith.constant dense<0.000000e+00> : vector<8x128xf32>
    %123 = tpu.matmul %118, %84, %cst_74 {dimension_numbers = #tpu.dot_dimension_numbers<[1], [0], [0], [1], [0, 0, 1, 1], [], []>} : vector<8x128xf32>, vector<128x128xf32>, vector<8x128xf32> -> vector<8x128xf32>
    %124 = arith.addf %122, %123 : vector<8x128xf32>
    %125 = math.tanh %124 : vector<8x128xf32>
    %c5_i32_75 = arith.constant 5 : i32
    %c8_i32_76 = arith.constant 8 : i32
    %126 = arith.muli %c5_i32_75, %c8_i32_76 : i32
    %127 = tpu.assume_multiple %126, 8 : i32
    %128 = arith.index_cast %127 : i32 to index
    %c0_77 = arith.constant 0 : index
    %129 = vector.load %arg12[%128, %c0_77] : memref<64x128xf32, #tpu.memory_space<vmem>>, vector<8x128xf32>
    %cst_78 = arith.constant dense<0.000000e+00> : vector<8x128xf32>
    %130 = tpu.matmul %125, %84, %cst_78 {dimension_numbers = #tpu.dot_dimension_numbers<[1], [0], [0], [1], [0, 0, 1, 1], [], []>} : vector<8x128xf32>, vector<128x128xf32>, vector<8x128xf32> -> vector<8x128xf32>
    %131 = arith.addf %129, %130 : vector<8x128xf32>
    %132 = math.tanh %131 : vector<8x128xf32>
    %c6_i32_79 = arith.constant 6 : i32
    %c8_i32_80 = arith.constant 8 : i32
    %133 = arith.muli %c6_i32_79, %c8_i32_80 : i32
    %134 = tpu.assume_multiple %133, 8 : i32
    %135 = arith.index_cast %134 : i32 to index
    %c0_81 = arith.constant 0 : index
    %136 = vector.load %arg12[%135, %c0_81] : memref<64x128xf32, #tpu.memory_space<vmem>>, vector<8x128xf32>
    %cst_82 = arith.constant dense<0.000000e+00> : vector<8x128xf32>
    %137 = tpu.matmul %132, %84, %cst_82 {dimension_numbers = #tpu.dot_dimension_numbers<[1], [0], [0], [1], [0, 0, 1, 1], [], []>} : vector<8x128xf32>, vector<128x128xf32>, vector<8x128xf32> -> vector<8x128xf32>
    %138 = arith.addf %136, %137 : vector<8x128xf32>
    %139 = math.tanh %138 : vector<8x128xf32>
    %c7_i32_83 = arith.constant 7 : i32
    %c8_i32_84 = arith.constant 8 : i32
    %140 = arith.muli %c7_i32_83, %c8_i32_84 : i32
    %141 = tpu.assume_multiple %140, 8 : i32
    %142 = arith.index_cast %141 : i32 to index
    %c0_85 = arith.constant 0 : index
    %143 = vector.load %arg12[%142, %c0_85] : memref<64x128xf32, #tpu.memory_space<vmem>>, vector<8x128xf32>
    %cst_86 = arith.constant dense<0.000000e+00> : vector<8x128xf32>
    %144 = tpu.matmul %139, %84, %cst_86 {dimension_numbers = #tpu.dot_dimension_numbers<[1], [0], [0], [1], [0, 0, 1, 1], [], []>} : vector<8x128xf32>, vector<128x128xf32>, vector<8x128xf32> -> vector<8x128xf32>
    %145 = arith.addf %143, %144 : vector<8x128xf32>
    %146 = math.tanh %145 : vector<8x128xf32>
    %c8_i32_87 = arith.constant 8 : i32
    %c0_88 = arith.constant 0 : index
    %c0_89 = arith.constant 0 : index
    %147 = vector.load %arg8[%c0_88, %c0_89] : memref<128x128xf32, #tpu.memory_space<vmem>>, vector<128x128xf32>
    %cst_90 = arith.constant dense<0.000000e+00> : vector<8x128xf32>
    %148 = tpu.matmul %146, %147, %cst_90 {dimension_numbers = #tpu.dot_dimension_numbers<[1], [0], [0], [1], [0, 0, 1, 1], [], []>} : vector<8x128xf32>, vector<128x128xf32>, vector<8x128xf32> -> vector<8x128xf32>
    %c0_91 = arith.constant 0 : index
    %c0_92 = arith.constant 0 : index
    %149 = vector.load %arg9[%c0_91, %c0_92] : memref<1x128xf32, #tpu.memory_space<vmem>>, vector<1x128xf32>
    %150 = vector.broadcast %149 : vector<1x128xf32> to vector<8x128xf32>
    %151 = arith.addf %148, %150 : vector<8x128xf32>
    %c0_93 = arith.constant 0 : index
    %c0_94 = arith.constant 0 : index
    %152 = vector.load %arg10[%c0_93, %c0_94] : memref<8x128xf32, #tpu.memory_space<vmem>>, vector<8x128xf32>
    tpu.vector_store %arg10[%c0_93, %c0_94], %151 {strides = array<i32>} : memref<8x128xf32, #tpu.memory_space<vmem>>, vector<8x128xf32>,
    return
  }
  func.func @transform_0(%arg0: i32) -> (i32, i32, i32) {
    %c0_i32 = arith.constant 0 : i32
    %c0_i32_0 = arith.constant 0 : i32
    %c0_i32_1 = arith.constant 0 : i32
    return %arg0, %c0_i32, %c0_i32_0 : i32, i32, i32
  }
  func.func @transform_1(%arg0: i32) -> (i32, i32) {
    %c0_i32 = arith.constant 0 : i32
    %c0_i32_0 = arith.constant 0 : i32
    %c0_i32_1 = arith.constant 0 : i32
    return %c0_i32, %c0_i32_0 : i32, i32
  }
  func.func @transform_2(%arg0: i32) -> (i32, i32) {
    %c0_i32 = arith.constant 0 : i32
    %c0_i32_0 = arith.constant 0 : i32
    %c0_i32_1 = arith.constant 0 : i32
    return %c0_i32, %c0_i32_0 : i32, i32
  }
  func.func @transform_3(%arg0: i32) -> (i32, i32) {
    %c0_i32 = arith.constant 0 : i32
    %c0_i32_0 = arith.constant 0 : i32
    %c0_i32_1 = arith.constant 0 : i32
    return %c0_i32, %c0_i32_0 : i32, i32
  }
  func.func @transform_4(%arg0: i32) -> (i32, i32) {
    %c0_i32 = arith.constant 0 : i32
    %c0_i32_0 = arith.constant 0 : i32
    %c0_i32_1 = arith.constant 0 : i32
    return %c0_i32, %c0_i32_0 : i32, i32
  }
  func.func @transform_5(%arg0: i32) -> (i32, i32) {
    %c0_i32 = arith.constant 0 : i32
    %c0_i32_0 = arith.constant 0 : i32
    %c0_i32_1 = arith.constant 0 : i32
    return %c0_i32, %c0_i32_0 : i32, i32
  }
  func.func @transform_6(%arg0: i32) -> (i32, i32) {
    %c0_i32 = arith.constant 0 : i32
    %c0_i32_0 = arith.constant 0 : i32
    %c0_i32_1 = arith.constant 0 : i32
    return %c0_i32, %c0_i32_0 : i32, i32
  }
  func.func @transform_7(%arg0: i32) -> (i32, i32) {
    %c0_i32 = arith.constant 0 : i32
    %c0_i32_0 = arith.constant 0 : i32
    %c0_i32_1 = arith.constant 0 : i32
    return %c0_i32, %c0_i32_0 : i32, i32
  }
  func.func @transform_8(%arg0: i32) -> (i32, i32) {
    %c0_i32 = arith.constant 0 : i32
    %c0_i32_0 = arith.constant 0 : i32
    %c0_i32_1 = arith.constant 0 : i32
    return %c0_i32, %c0_i32_0 : i32, i32
  }
  func.func @transform_9(%arg0: i32) -> (i32, i32) {
    %c0_i32 = arith.constant 0 : i32
    %c0_i32_0 = arith.constant 0 : i32
    return %arg0, %c0_i32 : i32, i32
  }
}

</mosaic_0001>

<llo_original>
// kernel: tpu_custom_call.1
$region0: #{tpu_custom_call.1}
  #allocation0 [shape = 'u32[]', space=smem, size = 0x4, offset = 0x4, fixed_abs, tag = 'smem constant byte address 0x4 - core index']
  #allocation1 [shape = 'u32[144,128]{1,0:T(1,128)}', space=vmem, size = 0x12000, scoped, tag = 'internal scratch']
  #allocation2 [shape = 'f32[64,128]{1,0:T(8,128)}', space=vmem, size = 0x8000, scoped, tag = 'scratch operand']
  #allocation3 [shape = 'f32[64,128]{1,0:T(8,128)}', space=vmem, size = 0x8000, scoped, tag = 'scratch operand']
  %s0 = inlined_call_operand.vmem [shape: f32[1,64,4], index: 0, kind: input, shape index: {}]
  %s1 = inlined_call_operand.vmem [shape: f32[4,128], index: 1, kind: input, shape index: {}]
  %s2 = inlined_call_operand.hbm [shape: f32[128,128], index: 2, kind: input, shape index: {}]
  %s3 = inlined_call_operand.vmem [shape: f32[1,128], index: 3, kind: input, shape index: {}]
  %s4 = inlined_call_operand.hbm [shape: f32[128,128], index: 4, kind: input, shape index: {}]
  %s5 = inlined_call_operand.hbm [shape: f32[128,128], index: 5, kind: input, shape index: {}]
  %s6 = inlined_call_operand.vmem [shape: f32[1,128], index: 6, kind: input, shape index: {}]
  %s7 = inlined_call_operand.hbm [shape: f32[128,128], index: 7, kind: input, shape index: {}]
  %s8 = inlined_call_operand.vmem [shape: f32[1,128], index: 8, kind: input, shape index: {}]
  %s9 = inlined_call_operand.hbm [shape: f32[8,128], index: 9, kind: output, shape index: {}]
  %s10 = sld [smem:[#allocation0]]
  $region62: #{tpu_custom_call.1} parent=0
    _
  %s12 = ssub.s32 1, %s10
  %s13 = scalar_select 0, %s12, %s10
  $region1: #{tpu_custom_call.1} parent=0
    #allocation4 [shape = 'u8[65536]{0}', space=vmem, size = 0x10000, scoped, tag = 'input window, operand 2, single buffered']
    #allocation5 [shape = 's32[1]{0}', space=sflag, size = 0x4, scoped, tag = 'scoped memory for tpu_custom_call.1']
    #allocation6 [shape = 's32[1]{0}', space=sflag, size = 0x4, scoped, tag = 'scoped memory for tpu_custom_call.1']
    #allocation7 [shape = 'u8[65536]{0}', space=vmem, size = 0x10000, scoped, tag = 'input window, operand 4, single buffered']
    #allocation8 [shape = 's32[1]{0}', space=sflag, size = 0x4, scoped, tag = 'scoped memory for tpu_custom_call.1']
    #allocation9 [shape = 'u8[65536]{0}', space=vmem, size = 0x10000, scoped, tag = 'input window, operand 5, single buffered']
    #allocation10 [shape = 'u8[65536]{0}', space=vmem, size = 0x10000, scoped, tag = 'input window, operand 7, single buffered']
    #allocation11 [shape = 's32[1]{0}', space=sflag, size = 0x4, scoped, tag = 'scoped memory for tpu_custom_call.1']
    #allocation12 [shape = 'u8[4096]{0}', space=vmem, size = 0x1000, scoped, tag = 'output window, operand 0, single buffered']
    %14 = vsyncpa [#allocation5], 0
    %15 = vsyncpa [#allocation8], 0
    %16 = vsyncpa [#allocation11], 0
    %17 = vsyncpa [#allocation6], 0
    // Predicated region
    $region2: #{tpu_custom_call.1} parent=1 // pred_check
      _
    $region3: #{tpu_custom_call.1} parent=1 // pred_check_branch
      %19 = sbr.rel (0) target = $region5
    $region4: #{tpu_custom_call.1} parent=1 // pred_region
      _
    $region5: #{tpu_custom_call.1} parent=1 // pred_fallthru
      _
    // Predicated region
    $region6: #{tpu_custom_call.1} parent=1 // pred_check
      _
    $region7: #{tpu_custom_call.1} parent=1 // pred_check_branch
      %21 = sbr.rel (0) target = $region9
    $region8: #{tpu_custom_call.1} parent=1 // pred_region
      _
    $region9: #{tpu_custom_call.1} parent=1 // pred_fallthru
      _
    // Predicated region
    $region10: #{tpu_custom_call.1} parent=1 // pred_check
      _
    $region11: #{tpu_custom_call.1} parent=1 // pred_check_branch
      %23 = sbr.rel (0) target = $region13
    $region12: #{tpu_custom_call.1} parent=1 // pred_region
      %s25 = ssub.s32 2048, 2048
      %26 = vsyncadd [#allocation5], %s25
      %s27 = sshll.u32 [#allocation4], 4
      %s28 = int_to_ptr.vmem [resolvable:$true] %s27
      %33 = dma.hbm_to_vmem [thread:$0]  %s2, 2048, %s28, [#allocation5], 128, 128, 8
    $region13: #{tpu_custom_call.1} parent=1 // pred_fallthru
      _
    // Predicated region
    $region14: #{tpu_custom_call.1} parent=1 // pred_check
      _
    $region15: #{tpu_custom_call.1} parent=1 // pred_check_branch
      %35 = sbr.rel (0) target = $region17
    $region16: #{tpu_custom_call.1} parent=1 // pred_region
      _
    $region17: #{tpu_custom_call.1} parent=1 // pred_fallthru
      _
    // Predicated region
    $region18: #{tpu_custom_call.1} parent=1 // pred_check
      _
    $region19: #{tpu_custom_call.1} parent=1 // pred_check_branch
      %37 = sbr.rel (0) target = $region21
    $region20: #{tpu_custom_call.1} parent=1 // pred_region
      %s39 = ssub.s32 2048, 2048
      %40 = vsyncadd [#allocation8], %s39
      %s41 = sshll.u32 [#allocation7], 4
      %s42 = int_to_ptr.vmem [resolvable:$true] %s41
      %47 = dma.hbm_to_vmem [thread:$0]  %s4, 2048, %s42, [#allocation8], 128, 128, 8
    $region21: #{tpu_custom_call.1} parent=1 // pred_fallthru
      _
    // Predicated region
    $region22: #{tpu_custom_call.1} parent=1 // pred_check
      _
    $region23: #{tpu_custom_call.1} parent=1 // pred_check_branch
      %49 = sbr.rel (0) target = $region25
    $region24: #{tpu_custom_call.1} parent=1 // pred_region
      %s51 = ssub.s32 2048, 2048
      %52 = vsyncadd [#allocation8], %s51
      %s53 = sshll.u32 [#allocation9], 4
      %s54 = int_to_ptr.vmem [resolvable:$true] %s53
      %59 = dma.hbm_to_vmem [thread:$0]  %s5, 2048, %s54, [#allocation8], 128, 128, 8
    $region25: #{tpu_custom_call.1} parent=1 // pred_fallthru
      _
    // Predicated region
    $region26: #{tpu_custom_call.1} parent=1 // pred_check
      _
    $region27: #{tpu_custom_call.1} parent=1 // pred_check_branch
      %61 = sbr.rel (0) target = $region29
    $region28: #{tpu_custom_call.1} parent=1 // pred_region
      _
    $region29: #{tpu_custom_call.1} parent=1 // pred_fallthru
      _
    // Predicated region
    $region30: #{tpu_custom_call.1} parent=1 // pred_check
      _
    $region31: #{tpu_custom_call.1} parent=1 // pred_check_branch
      %63 = sbr.rel (0) target = $region33
    $region32: #{tpu_custom_call.1} parent=1 // pred_region
      %s65 = ssub.s32 2048, 2048
      %66 = vsyncadd [#allocation11], %s65
      %s67 = sshll.u32 [#allocation10], 4
      %s68 = int_to_ptr.vmem [resolvable:$true] %s67
      %73 = dma.hbm_to_vmem [thread:$0]  %s7, 2048, %s68, [#allocation11], 128, 128, 8
    $region33: #{tpu_custom_call.1} parent=1 // pred_fallthru
      _
    // Predicated region
    $region34: #{tpu_custom_call.1} parent=1 // pred_check
      _
    $region35: #{tpu_custom_call.1} parent=1 // pred_check_branch
      %75 = sbr.rel (0) target = $region37
    $region36: #{tpu_custom_call.1} parent=1 // pred_region
      _
    $region37: #{tpu_custom_call.1} parent=1 // pred_fallthru
      _
    // Predicated region
    $region38: #{tpu_custom_call.1} parent=1 // pred_check
      _
    $region39: #{tpu_custom_call.1} parent=1 // pred_check_branch
      %77 = sbr.rel (0) target = $region41
    $region40: #{tpu_custom_call.1} parent=1 // pred_region
      %78 = dma.done [#allocation5], 2048
    $region41: #{tpu_custom_call.1} parent=1 // pred_fallthru
      _
    // Predicated region
    $region42: #{tpu_custom_call.1} parent=1 // pred_check
      _
    $region43: #{tpu_custom_call.1} parent=1 // pred_check_branch
      %80 = sbr.rel (0) target = $region45
    $region44: #{tpu_custom_call.1} parent=1 // pred_region
      %81 = dma.done [#allocation8], 2048
    $region45: #{tpu_custom_call.1} parent=1 // pred_fallthru
      _
    // Predicated region
    $region46: #{tpu_custom_call.1} parent=1 // pred_check
      _
    $region47: #{tpu_custom_call.1} parent=1 // pred_check_branch
      %83 = sbr.rel (0) target = $region49
    $region48: #{tpu_custom_call.1} parent=1 // pred_region
      %84 = dma.done [#allocation8], 2048
    $region49: #{tpu_custom_call.1} parent=1 // pred_fallthru
      _
    // Predicated region
    $region50: #{tpu_custom_call.1} parent=1 // pred_check
      _
    $region51: #{tpu_custom_call.1} parent=1 // pred_check_branch
      %86 = sbr.rel (0) target = $region53
    $region52: #{tpu_custom_call.1} parent=1 // pred_region
      %87 = dma.done [#allocation11], 2048
    $region53: #{tpu_custom_call.1} parent=1 // pred_fallthru
      _
    %v88 = vld [vmem:[%s3] sm:$0x1]
    %v89 = vld [vmem:[%s1] sm:$0xf]
    %v90 = vld [vmem:[#allocation4] sm:$0xff]
    %v91 = vld [vmem:[#allocation4 + $0x8] sm:$0xff]
    %v92 = vld [vmem:[#allocation4 + $0x10] sm:$0xff]
    %v93 = vld [vmem:[#allocation4 + $0x18] sm:$0xff]
    %v94 = vld [vmem:[#allocation4 + $0x20] sm:$0xff]
    %v95 = vld [vmem:[#allocation4 + $0x28] sm:$0xff]
    %v96 = vld [vmem:[#allocation4 + $0x30] sm:$0xff]
    %v97 = vld [vmem:[#allocation4 + $0x38] sm:$0xff]
    %v98 = vld [vmem:[#allocation4 + $0x40] sm:$0xff]
    %v99 = vld [vmem:[#allocation4 + $0x48] sm:$0xff]
    %v100 = vld [vmem:[#allocation4 + $0x50] sm:$0xff]
    %v101 = vld [vmem:[#allocation4 + $0x58] sm:$0xff]
    %v102 = vld [vmem:[#allocation4 + $0x60] sm:$0xff]
    %v103 = vld [vmem:[#allocation4 + $0x68] sm:$0xff]
    %v104 = vld [vmem:[#allocation4 + $0x70] sm:$0xff]
    %v105 = vld [vmem:[#allocation4 + $0x78] sm:$0xff]
    %v106 = vld [vmem:[%s0] sm:$0xff]
    %v107 = vld [vmem:[%s0 + $0x8] sm:$0xff]
    %v108 = vld [vmem:[%s0 + $0x10] sm:$0xff]
    %v109 = vld [vmem:[%s0 + $0x18] sm:$0xff]
    %v110 = vld [vmem:[%s0 + $0x20] sm:$0xff]
    %v111 = vld [vmem:[%s0 + $0x28] sm:$0xff]
    %v112 = vld [vmem:[%s0 + $0x30] sm:$0xff]
    %v113 = vld [vmem:[%s0 + $0x38] sm:$0xff]
    %v115 = vlaneseq
    %v116 = vshrl.u32 %v115, 7
    %v117 = vsub.s32 0, %v116
    %v118 = vrot.slane %v88, %v117
    %vm120 = vcmask 31744
    %v122 = vsel %vm120, %v106, 0
    %v125 = vsel %vm120, %v107, 0
    %v128 = vsel %vm120, %v108, 0
    %v131 = vsel %vm120, %v109, 0
    %v134 = vsel %vm120, %v110, 0
    %v137 = vsel %vm120, %v111, 0
    %v140 = vsel %vm120, %v112, 0
    %v143 = vsel %vm120, %v113, 0
    %vm145 = vcmask 1043456
    %v147 = vsel %vm145, %v89, 0
    %149 = vmatprep.subr.mxu0 0.0
    %150 = vmatpush1.msra.mxu0 0.0
    %151 = vmatprep.subr.mxu0 0.0
    %152 = vmatpush1.msra.mxu0 0.0
    %153 = vmatprep.subr.mxu0 0.0
    %154 = vmatpush1.msra.mxu0 0.0
    %155 = vmatprep.subr.mxu0 0.0
    %156 = vmatpush1.msra.mxu0 0.0
    %157 = vmatprep.subr.mxu0 0.0
    %158 = vmatpush1.msra.mxu0 0.0
    %159 = vmatprep.subr.mxu0 0.0
    %160 = vmatpush1.msra.mxu0 0.0
    %161 = vmatprep.subr.mxu0 0.0
    %162 = vmatpush1.msra.mxu0 0.0
    %163 = vmatprep.subr.mxu0 0.0
    %164 = vmatpush1.msra.mxu0 0.0
    %165 = vmatprep.subr.mxu0 0.0
    %166 = vmatpush1.msra.mxu0 0.0
    %167 = vmatprep.subr.mxu0 0.0
    %168 = vmatpush1.msra.mxu0 0.0
    %169 = vmatprep.subr.mxu0 0.0
    %170 = vmatpush1.msra.mxu0 0.0
    %171 = vmatprep.subr.mxu0 0.0
    %172 = vmatpush1.msra.mxu0 0.0
    %173 = vmatprep.subr.mxu0 0.0
    %174 = vmatpush1.msra.mxu0 0.0
    %175 = vmatprep.subr.mxu0 0.0
    %176 = vmatpush1.msra.mxu0 0.0
    %177 = vmatprep.subr.mxu0 0.0
    %178 = vmatpush1.msra.mxu0 0.0
    %179 = vmatprep.subr.mxu0 0.0
    %180 = vmatpush1.msra.mxu0 %v147
    %181 = vmatprep.subr.mxu0 0.0
    %182 = vmatpush2.msra.mxu0 0.0
    %183 = vmatprep.subr.mxu0 0.0
    %184 = vmatpush2.msra.mxu0 0.0
    %185 = vmatprep.subr.mxu0 0.0
    %186 = vmatpush2.msra.mxu0 0.0
    %187 = vmatprep.subr.mxu0 0.0
    %188 = vmatpush2.msra.mxu0 0.0
    %189 = vmatprep.subr.mxu0 0.0
    %190 = vmatpush2.msra.mxu0 0.0
    %191 = vmatprep.subr.mxu0 0.0
    %192 = vmatpush2.msra.mxu0 0.0
    %193 = vmatprep.subr.mxu0 0.0
    %194 = vmatpush2.msra.mxu0 0.0
    %195 = vmatprep.subr.mxu0 0.0
    %196 = vmatpush2.msra.mxu0 0.0
    %197 = vmatprep.subr.mxu0 0.0
    %198 = vmatpush2.msra.mxu0 0.0
    %199 = vmatprep.subr.mxu0 0.0
    %200 = vmatpush2.msra.mxu0 0.0
    %201 = vmatprep.subr.mxu0 0.0
    %202 = vmatpush2.msra.mxu0 0.0
    %203 = vmatprep.subr.mxu0 0.0
    %204 = vmatpush2.msra.mxu0 0.0
    %205 = vmatprep.subr.mxu0 0.0
    %206 = vmatpush2.msra.mxu0 0.0
    %207 = vmatprep.subr.mxu0 0.0
    %208 = vmatpush2.msra.mxu0 0.0
    %209 = vmatprep.subr.mxu0 0.0
    %210 = vmatpush2.msra.mxu0 0.0
    %211 = vmatprep.subr.mxu0 0.0
    %212 = vmatpush2.msra.mxu0 0.0
    %213 = vmatprep.mubr.f32.mxu0 0.0
    %214 = vmatmul.mubr.f32.gmra.mxu0 %v122
    %v215 = vpop.f32.mrf.mxu0
    %v216 = vadd.f32 %v118, %v215
    %v217 = vpop.f32.mrf.mxu0
    %218 = vmatprep.mubr.f32.mxu0 0.0
    %219 = vmatmul.mubr.f32.gmra.mxu0 %v125
    %v220 = vpop.f32.mrf.mxu0
    %v221 = vadd.f32 %v118, %v220
    %v222 = vpop.f32.mrf.mxu0
    %223 = vmatprep.mubr.f32.mxu0 0.0
    %224 = vmatmul.mubr.f32.gmra.mxu0 %v128
    %v225 = vpop.f32.mrf.mxu0
    %v226 = vadd.f32 %v118, %v225
    %v227 = vpop.f32.mrf.mxu0
    %228 = vmatprep.mubr.f32.mxu0 0.0
    %229 = vmatmul.mubr.f32.gmra.mxu0 %v131
    %v230 = vpop.f32.mrf.mxu0
    %v231 = vadd.f32 %v118, %v230
    %v232 = vpop.f32.mrf.mxu0
    %233 = vmatprep.mubr.f32.mxu0 0.0
    %234 = vmatmul.mubr.f32.gmra.mxu0 %v134
    %v235 = vpop.f32.mrf.mxu0
    %v236 = vadd.f32 %v118, %v235
    %v237 = vpop.f32.mrf.mxu0
    %238 = vmatprep.mubr.f32.mxu0 0.0
    %239 = vmatmul.mubr.f32.gmra.mxu0 %v137
    %v240 = vpop.f32.mrf.mxu0
    %v241 = vadd.f32 %v118, %v240
    %v242 = vpop.f32.mrf.mxu0
    %243 = vmatprep.mubr.f32.mxu0 0.0
    %244 = vmatmul.mubr.f32.gmra.mxu0 %v140
    %v245 = vpop.f32.mrf.mxu0
    %v246 = vadd.f32 %v118, %v245
    %v247 = vpop.f32.mrf.mxu0
    %248 = vmatprep.mubr.f32.mxu0 0.0
    %249 = vmatmul.mubr.f32.gmra.mxu0 %v143
    %v250 = vpop.f32.mrf.mxu0
    %v251 = vadd.f32 %v118, %v250
    %v252 = vpop.f32.mrf.mxu0
    %253 = vdwg.mxu0
    %254 = vst [vmem:[#allocation2] sm:$0xff] %v216
    %255 = vst [vmem:[#allocation2 + $0x8] sm:$0xff] %v221
    %256 = vst [vmem:[#allocation2 + $0x10] sm:$0xff] %v226
    %257 = vst [vmem:[#allocation2 + $0x18] sm:$0xff] %v231
    %258 = vst [vmem:[#allocation2 + $0x20] sm:$0xff] %v236
    %259 = vst [vmem:[#allocation2 + $0x28] sm:$0xff] %v241
    %260 = vst [vmem:[#allocation2 + $0x30] sm:$0xff] %v246
    %261 = vst [vmem:[#allocation2 + $0x38] sm:$0xff] %v251
    %v262 = vld [vmem:[#allocation2] sm:$0xff]
    %263 = vmatprep.subr.mxu0 0.0
    %264 = vmatpush1.msra.mxu0 %v105
    %265 = vmatprep.subr.mxu0 0.0
    %266 = vmatpush1.msra.mxu0 %v104
    %267 = vmatprep.subr.mxu0 0.0
    %268 = vmatpush1.msra.mxu0 %v103
    %269 = vmatprep.subr.mxu0 0.0
    %270 = vmatpush1.msra.mxu0 %v102
    %271 = vmatprep.subr.mxu0 0.0
    %272 = vmatpush1.msra.mxu0 %v101
    %273 = vmatprep.subr.mxu0 0.0
    %274 = vmatpush1.msra.mxu0 %v100
    %275 = vmatprep.subr.mxu0 0.0
    %276 = vmatpush1.msra.mxu0 %v99
    %277 = vmatprep.subr.mxu0 0.0
    %278 = vmatpush1.msra.mxu0 %v98
    %279 = vmatprep.subr.mxu0 0.0
    %280 = vmatpush1.msra.mxu0 %v97
    %281 = vmatprep.subr.mxu0 0.0
    %282 = vmatpush1.msra.mxu0 %v96
    %283 = vmatprep.subr.mxu0 0.0
    %284 = vmatpush1.msra.mxu0 %v95
    %285 = vmatprep.subr.mxu0 0.0
    %286 = vmatpush1.msra.mxu0 %v94
    %287 = vmatprep.subr.mxu0 0.0
    %288 = vmatpush1.msra.mxu0 %v93
    %289 = vmatprep.subr.mxu0 0.0
    %290 = vmatpush1.msra.mxu0 %v92
    %291 = vmatprep.subr.mxu0 0.0
    %292 = vmatpush1.msra.mxu0 %v91
    %293 = vmatprep.subr.mxu0 0.0
    %294 = vmatpush1.msra.mxu0 %v90
    %295 = vmatprep.subr.mxu0 0.0
    %296 = vmatpush2.msra.mxu0 0.0
    %297 = vmatprep.subr.mxu0 0.0
    %298 = vmatpush2.msra.mxu0 0.0
    %299 = vmatprep.subr.mxu0 0.0
    %300 = vmatpush2.msra.mxu0 0.0
    %301 = vmatprep.subr.mxu0 0.0
    %302 = vmatpush2.msra.mxu0 0.0
    %303 = vmatprep.subr.mxu0 0.0
    %304 = vmatpush2.msra.mxu0 0.0
    %305 = vmatprep.subr.mxu0 0.0
    %306 = vmatpush2.msra.mxu0 0.0
    %307 = vmatprep.subr.mxu0 0.0
    %308 = vmatpush2.msra.mxu0 0.0
    %309 = vmatprep.subr.mxu0 0.0
    %310 = vmatpush2.msra.mxu0 0.0
    %311 = vmatprep.subr.mxu0 0.0
    %312 = vmatpush2.msra.mxu0 0.0
    %313 = vmatprep.subr.mxu0 0.0
    %314 = vmatpush2.msra.mxu0 0.0
    %315 = vmatprep.subr.mxu0 0.0
    %316 = vmatpush2.msra.mxu0 0.0
    %317 = vmatprep.subr.mxu0 0.0
    %318 = vmatpush2.msra.mxu0 0.0
    %319 = vmatprep.subr.mxu0 0.0
    %320 = vmatpush2.msra.mxu0 0.0
    %321 = vmatprep.subr.mxu0 0.0
    %322 = vmatpush2.msra.mxu0 0.0
    %323 = vmatprep.subr.mxu0 0.0
    %324 = vmatpush2.msra.mxu0 0.0
    %325 = vmatprep.subr.mxu0 0.0
    %326 = vmatpush2.msra.mxu0 0.0
    %327 = vmatprep.mubr.f32.mxu0 0.0
    %328 = vmatmul.mubr.f32.gmra.mxu0 0.0
    %v329 = vpop.f32.mrf.mxu0
    %v330 = vadd.f32 0.0, %v329
    %v331 = vpop.f32.mrf.mxu0
    %332 = vdwg.mxu0
    %v333 = vadd.f32 %v262, %v330
    %v334 = vtanh.pop %v333
    %335 = vst [vmem:[#allocation2] sm:$0xff] %v334
    %s336 = scalar_lea.vmem [#allocation2], 8
    %v337 = vld [vmem:[%s336] sm:$0xff]
    %338 = vmatprep.subr.mxu0 0.0
    %339 = vmatpush1.msra.mxu0 %v105
    %340 = vmatprep.subr.mxu0 0.0
    %341 = vmatpush1.msra.mxu0 %v104
    %342 = vmatprep.subr.mxu0 0.0
    %343 = vmatpush1.msra.mxu0 %v103
    %344 = vmatprep.subr.mxu0 0.0
    %345 = vmatpush1.msra.mxu0 %v102
    %346 = vmatprep.subr.mxu0 0.0
    %347 = vmatpush1.msra.mxu0 %v101
    %348 = vmatprep.subr.mxu0 0.0
    %349 = vmatpush1.msra.mxu0 %v100
    %350 = vmatprep.subr.mxu0 0.0
    %351 = vmatpush1.msra.mxu0 %v99
    %352 = vmatprep.subr.mxu0 0.0
    %353 = vmatpush1.msra.mxu0 %v98
    %354 = vmatprep.subr.mxu0 0.0
    %355 = vmatpush1.msra.mxu0 %v97
    %356 = vmatprep.subr.mxu0 0.0
    %357 = vmatpush1.msra.mxu0 %v96
    %358 = vmatprep.subr.mxu0 0.0
    %359 = vmatpush1.msra.mxu0 %v95
    %360 = vmatprep.subr.mxu0 0.0
    %361 = vmatpush1.msra.mxu0 %v94
    %362 = vmatprep.subr.mxu0 0.0
    %363 = vmatpush1.msra.mxu0 %v93
    %364 = vmatprep.subr.mxu0 0.0
    %365 = vmatpush1.msra.mxu0 %v92
    %366 = vmatprep.subr.mxu0 0.0
    %367 = vmatpush1.msra.mxu0 %v91
    %368 = vmatprep.subr.mxu0 0.0
    %369 = vmatpush1.msra.mxu0 %v90
    %370 = vmatprep.subr.mxu0 0.0
    %371 = vmatpush2.msra.mxu0 0.0
    %372 = vmatprep.subr.mxu0 0.0
    %373 = vmatpush2.msra.mxu0 0.0
    %374 = vmatprep.subr.mxu0 0.0
    %375 = vmatpush2.msra.mxu0 0.0
    %376 = vmatprep.subr.mxu0 0.0
    %377 = vmatpush2.msra.mxu0 0.0
    %378 = vmatprep.subr.mxu0 0.0
    %379 = vmatpush2.msra.mxu0 0.0
    %380 = vmatprep.subr.mxu0 0.0
    %381 = vmatpush2.msra.mxu0 0.0
    %382 = vmatprep.subr.mxu0 0.0
    %383 = vmatpush2.msra.mxu0 0.0
    %384 = vmatprep.subr.mxu0 0.0
    %385 = vmatpush2.msra.mxu0 0.0
    %386 = vmatprep.subr.mxu0 0.0
    %387 = vmatpush2.msra.mxu0 0.0
    %388 = vmatprep.subr.mxu0 0.0
    %389 = vmatpush2.msra.mxu0 0.0
    %390 = vmatprep.subr.mxu0 0.0
    %391 = vmatpush2.msra.mxu0 0.0
    %392 = vmatprep.subr.mxu0 0.0
    %393 = vmatpush2.msra.mxu0 0.0
    %394 = vmatprep.subr.mxu0 0.0
    %395 = vmatpush2.msra.mxu0 0.0
    %396 = vmatprep.subr.mxu0 0.0
    %397 = vmatpush2.msra.mxu0 0.0
    %398 = vmatprep.subr.mxu0 0.0
    %399 = vmatpush2.msra.mxu0 0.0
    %400 = vmatprep.subr.mxu0 0.0
    %401 = vmatpush2.msra.mxu0 0.0
    %402 = vmatprep.mubr.f32.mxu0 0.0
    %403 = vmatmul.mubr.f32.gmra.mxu0 %v334
    %v404 = vpop.f32.mrf.mxu0
    %v405 = vadd.f32 0.0, %v404
    %v406 = vpop.f32.mrf.mxu0
    %407 = vdwg.mxu0
    %v408 = vadd.f32 %v337, %v405
    %v409 = vtanh.pop %v408
    %410 = vst [vmem:[%s336] sm:$0xff] %v409
    %s411 = scalar_lea.vmem [#allocation2], 16
    %v412 = vld [vmem:[%s411] sm:$0xff]
    %413 = vmatprep.subr.mxu0 0.0
    %414 = vmatpush1.msra.mxu0 %v105
    %415 = vmatprep.subr.mxu0 0.0
    %416 = vmatpush1.msra.mxu0 %v104
    %417 = vmatprep.subr.mxu0 0.0
    %418 = vmatpush1.msra.mxu0 %v103
    %419 = vmatprep.subr.mxu0 0.0
    %420 = vmatpush1.msra.mxu0 %v102
    %421 = vmatprep.subr.mxu0 0.0
    %422 = vmatpush1.msra.mxu0 %v101
    %423 = vmatprep.subr.mxu0 0.0
    %424 = vmatpush1.msra.mxu0 %v100
    %425 = vmatprep.subr.mxu0 0.0
    %426 = vmatpush1.msra.mxu0 %v99
    %427 = vmatprep.subr.mxu0 0.0
    %428 = vmatpush1.msra.mxu0 %v98
    %429 = vmatprep.subr.mxu0 0.0
    %430 = vmatpush1.msra.mxu0 %v97
    %431 = vmatprep.subr.mxu0 0.0
    %432 = vmatpush1.msra.mxu0 %v96
    %433 = vmatprep.subr.mxu0 0.0
    %434 = vmatpush1.msra.mxu0 %v95
    %435 = vmatprep.subr.mxu0 0.0
    %436 = vmatpush1.msra.mxu0 %v94
    %437 = vmatprep.subr.mxu0 0.0
    %438 = vmatpush1.msra.mxu0 %v93
    %439 = vmatprep.subr.mxu0 0.0
    %440 = vmatpush1.msra.mxu0 %v92
    %441 = vmatprep.subr.mxu0 0.0
    %442 = vmatpush1.msra.mxu0 %v91
    %443 = vmatprep.subr.mxu0 0.0
    %444 = vmatpush1.msra.mxu0 %v90
    %445 = vmatprep.subr.mxu0 0.0
    %446 = vmatpush2.msra.mxu0 0.0
    %447 = vmatprep.subr.mxu0 0.0
    %448 = vmatpush2.msra.mxu0 0.0
    %449 = vmatprep.subr.mxu0 0.0
    %450 = vmatpush2.msra.mxu0 0.0
    %451 = vmatprep.subr.mxu0 0.0
    %452 = vmatpush2.msra.mxu0 0.0
    %453 = vmatprep.subr.mxu0 0.0
    %454 = vmatpush2.msra.mxu0 0.0
    %455 = vmatprep.subr.mxu0 0.0
    %456 = vmatpush2.msra.mxu0 0.0
    %457 = vmatprep.subr.mxu0 0.0
    %458 = vmatpush2.msra.mxu0 0.0
    %459 = vmatprep.subr.mxu0 0.0
    %460 = vmatpush2.msra.mxu0 0.0
    %461 = vmatprep.subr.mxu0 0.0
    %462 = vmatpush2.msra.mxu0 0.0
    %463 = vmatprep.subr.mxu0 0.0
    %464 = vmatpush2.msra.mxu0 0.0
    %465 = vmatprep.subr.mxu0 0.0
    %466 = vmatpush2.msra.mxu0 0.0
    %467 = vmatprep.subr.mxu0 0.0
    %468 = vmatpush2.msra.mxu0 0.0
    %469 = vmatprep.subr.mxu0 0.0
    %470 = vmatpush2.msra.mxu0 0.0
    %471 = vmatprep.subr.mxu0 0.0
    %472 = vmatpush2.msra.mxu0 0.0
    %473 = vmatprep.subr.mxu0 0.0
    %474 = vmatpush2.msra.mxu0 0.0
    %475 = vmatprep.subr.mxu0 0.0
    %476 = vmatpush2.msra.mxu0 0.0
    %477 = vmatprep.mubr.f32.mxu0 0.0
    %478 = vmatmul.mubr.f32.gmra.mxu0 %v409
    %v479 = vpop.f32.mrf.mxu0
    %v480 = vadd.f32 0.0, %v479
    %v481 = vpop.f32.mrf.mxu0
    %482 = vdwg.mxu0
    %v483 = vadd.f32 %v412, %v480
    %v484 = vtanh.pop %v483
    %485 = vst [vmem:[%s411] sm:$0xff] %v484
    %s486 = scalar_lea.vmem [#allocation2], 24
    %v487 = vld [vmem:[%s486] sm:$0xff]
    %488 = vmatprep.subr.mxu0 0.0
    %489 = vmatpush1.msra.mxu0 %v105
    %490 = vmatprep.subr.mxu0 0.0
    %491 = vmatpush1.msra.mxu0 %v104
    %492 = vmatprep.subr.mxu0 0.0
    %493 = vmatpush1.msra.mxu0 %v103
    %494 = vmatprep.subr.mxu0 0.0
    %495 = vmatpush1.msra.mxu0 %v102
    %496 = vmatprep.subr.mxu0 0.0
    %497 = vmatpush1.msra.mxu0 %v101
    %498 = vmatprep.subr.mxu0 0.0
    %499 = vmatpush1.msra.mxu0 %v100
    %500 = vmatprep.subr.mxu0 0.0
    %501 = vmatpush1.msra.mxu0 %v99
    %502 = vmatprep.subr.mxu0 0.0
    %503 = vmatpush1.msra.mxu0 %v98
    %504 = vmatprep.subr.mxu0 0.0
    %505 = vmatpush1.msra.mxu0 %v97
    %506 = vmatprep.subr.mxu0 0.0
    %507 = vmatpush1.msra.mxu0 %v96
    %508 = vmatprep.subr.mxu0 0.0
    %509 = vmatpush1.msra.mxu0 %v95
    %510 = vmatprep.subr.mxu0 0.0
    %511 = vmatpush1.msra.mxu0 %v94
    %512 = vmatprep.subr.mxu0 0.0
    %513 = vmatpush1.msra.mxu0 %v93
    %514 = vmatprep.subr.mxu0 0.0
    %515 = vmatpush1.msra.mxu0 %v92
    %516 = vmatprep.subr.mxu0 0.0
    %517 = vmatpush1.msra.mxu0 %v91
    %518 = vmatprep.subr.mxu0 0.0
    %519 = vmatpush1.msra.mxu0 %v90
    %520 = vmatprep.subr.mxu0 0.0
    %521 = vmatpush2.msra.mxu0 0.0
    %522 = vmatprep.subr.mxu0 0.0
    %523 = vmatpush2.msra.mxu0 0.0
    %524 = vmatprep.subr.mxu0 0.0
    %525 = vmatpush2.msra.mxu0 0.0
    %526 = vmatprep.subr.mxu0 0.0
    %527 = vmatpush2.msra.mxu0 0.0
    %528 = vmatprep.subr.mxu0 0.0
    %529 = vmatpush2.msra.mxu0 0.0
    %530 = vmatprep.subr.mxu0 0.0
    %531 = vmatpush2.msra.mxu0 0.0
    %532 = vmatprep.subr.mxu0 0.0
    %533 = vmatpush2.msra.mxu0 0.0
    %534 = vmatprep.subr.mxu0 0.0
    %535 = vmatpush2.msra.mxu0 0.0
    %536 = vmatprep.subr.mxu0 0.0
    %537 = vmatpush2.msra.mxu0 0.0
    %538 = vmatprep.subr.mxu0 0.0
    %539 = vmatpush2.msra.mxu0 0.0
    %540 = vmatprep.subr.mxu0 0.0
    %541 = vmatpush2.msra.mxu0 0.0
    %542 = vmatprep.subr.mxu0 0.0
    %543 = vmatpush2.msra.mxu0 0.0
    %544 = vmatprep.subr.mxu0 0.0
    %545 = vmatpush2.msra.mxu0 0.0
    %546 = vmatprep.subr.mxu0 0.0
    %547 = vmatpush2.msra.mxu0 0.0
    %548 = vmatprep.subr.mxu0 0.0
    %549 = vmatpush2.msra.mxu0 0.0
    %550 = vmatprep.subr.mxu0 0.0
    %551 = vmatpush2.msra.mxu0 0.0
    %552 = vmatprep.mubr.f32.mxu0 0.0
    %553 = vmatmul.mubr.f32.gmra.mxu0 %v484
    %v554 = vpop.f32.mrf.mxu0
    %v555 = vadd.f32 0.0, %v554
    %v556 = vpop.f32.mrf.mxu0
    %557 = vdwg.mxu0
    %v558 = vadd.f32 %v487, %v555
    %v559 = vtanh.pop %v558
    %560 = vst [vmem:[%s486] sm:$0xff] %v559
    %s561 = scalar_lea.vmem [#allocation2], 32
    %v562 = vld [vmem:[%s561] sm:$0xff]
    %563 = vmatprep.subr.mxu0 0.0
    %564 = vmatpush1.msra.mxu0 %v105
    %565 = vmatprep.subr.mxu0 0.0
    %566 = vmatpush1.msra.mxu0 %v104
    %567 = vmatprep.subr.mxu0 0.0
    %568 = vmatpush1.msra.mxu0 %v103
    %569 = vmatprep.subr.mxu0 0.0
    %570 = vmatpush1.msra.mxu0 %v102
    %571 = vmatprep.subr.mxu0 0.0
    %572 = vmatpush1.msra.mxu0 %v101
    %573 = vmatprep.subr.mxu0 0.0
    %574 = vmatpush1.msra.mxu0 %v100
    %575 = vmatprep.subr.mxu0 0.0
    %576 = vmatpush1.msra.mxu0 %v99
    %577 = vmatprep.subr.mxu0 0.0
    %578 = vmatpush1.msra.mxu0 %v98
    %579 = vmatprep.subr.mxu0 0.0
    %580 = vmatpush1.msra.mxu0 %v97
    %581 = vmatprep.subr.mxu0 0.0
    %582 = vmatpush1.msra.mxu0 %v96
    %583 = vmatprep.subr.mxu0 0.0
    %584 = vmatpush1.msra.mxu0 %v95
    %585 = vmatprep.subr.mxu0 0.0
    %586 = vmatpush1.msra.mxu0 %v94
    %587 = vmatprep.subr.mxu0 0.0
    %588 = vmatpush1.msra.mxu0 %v93
    %589 = vmatprep.subr.mxu0 0.0
    %590 = vmatpush1.msra.mxu0 %v92
    %591 = vmatprep.subr.mxu0 0.0
    %592 = vmatpush1.msra.mxu0 %v91
    %593 = vmatprep.subr.mxu0 0.0
    %594 = vmatpush1.msra.mxu0 %v90
    %595 = vmatprep.subr.mxu0 0.0
    %596 = vmatpush2.msra.mxu0 0.0
    %597 = vmatprep.subr.mxu0 0.0
    %598 = vmatpush2.msra.mxu0 0.0
    %599 = vmatprep.subr.mxu0 0.0
    %600 = vmatpush2.msra.mxu0 0.0
    %601 = vmatprep.subr.mxu0 0.0
    %602 = vmatpush2.msra.mxu0 0.0
    %603 = vmatprep.subr.mxu0 0.0
    %604 = vmatpush2.msra.mxu0 0.0
    %605 = vmatprep.subr.mxu0 0.0
    %606 = vmatpush2.msra.mxu0 0.0
    %607 = vmatprep.subr.mxu0 0.0
    %608 = vmatpush2.msra.mxu0 0.0
    %609 = vmatprep.subr.mxu0 0.0
    %610 = vmatpush2.msra.mxu0 0.0
    %611 = vmatprep.subr.mxu0 0.0
    %612 = vmatpush2.msra.mxu0 0.0
    %613 = vmatprep.subr.mxu0 0.0
    %614 = vmatpush2.msra.mxu0 0.0
    %615 = vmatprep.subr.mxu0 0.0
    %616 = vmatpush2.msra.mxu0 0.0
    %617 = vmatprep.subr.mxu0 0.0
    %618 = vmatpush2.msra.mxu0 0.0
    %619 = vmatprep.subr.mxu0 0.0
    %620 = vmatpush2.msra.mxu0 0.0
    %621 = vmatprep.subr.mxu0 0.0
    %622 = vmatpush2.msra.mxu0 0.0
    %623 = vmatprep.subr.mxu0 0.0
    %624 = vmatpush2.msra.mxu0 0.0
    %625 = vmatprep.subr.mxu0 0.0
    %626 = vmatpush2.msra.mxu0 0.0
    %627 = vmatprep.mubr.f32.mxu0 0.0
    %628 = vmatmul.mubr.f32.gmra.mxu0 %v559
    %v629 = vpop.f32.mrf.mxu0
    %v630 = vadd.f32 0.0, %v629
    %v631 = vpop.f32.mrf.mxu0
    %632 = vdwg.mxu0
    %v633 = vadd.f32 %v562, %v630
    %v634 = vtanh.pop %v633
    %635 = vst [vmem:[%s561] sm:$0xff] %v634
    %s636 = scalar_lea.vmem [#allocation2], 40
    %v637 = vld [vmem:[%s636] sm:$0xff]
    %638 = vmatprep.subr.mxu0 0.0
    %639 = vmatpush1.msra.mxu0 %v105
    %640 = vmatprep.subr.mxu0 0.0
    %641 = vmatpush1.msra.mxu0 %v104
    %642 = vmatprep.subr.mxu0 0.0
    %643 = vmatpush1.msra.mxu0 %v103
    %644 = vmatprep.subr.mxu0 0.0
    %645 = vmatpush1.msra.mxu0 %v102
    %646 = vmatprep.subr.mxu0 0.0
    %647 = vmatpush1.msra.mxu0 %v101
    %648 = vmatprep.subr.mxu0 0.0
    %649 = vmatpush1.msra.mxu0 %v100
    %650 = vmatprep.subr.mxu0 0.0
    %651 = vmatpush1.msra.mxu0 %v99
    %652 = vmatprep.subr.mxu0 0.0
    %653 = vmatpush1.msra.mxu0 %v98
    %654 = vmatprep.subr.mxu0 0.0
    %655 = vmatpush1.msra.mxu0 %v97
    %656 = vmatprep.subr.mxu0 0.0
    %657 = vmatpush1.msra.mxu0 %v96
    %658 = vmatprep.subr.mxu0 0.0
    %659 = vmatpush1.msra.mxu0 %v95
    %660 = vmatprep.subr.mxu0 0.0
    %661 = vmatpush1.msra.mxu0 %v94
    %662 = vmatprep.subr.mxu0 0.0
    %663 = vmatpush1.msra.mxu0 %v93
    %664 = vmatprep.subr.mxu0 0.0
    %665 = vmatpush1.msra.mxu0 %v92
    %666 = vmatprep.subr.mxu0 0.0
    %667 = vmatpush1.msra.mxu0 %v91
    %668 = vmatprep.subr.mxu0 0.0
    %669 = vmatpush1.msra.mxu0 %v90
    %670 = vmatprep.subr.mxu0 0.0
    %671 = vmatpush2.msra.mxu0 0.0
    %672 = vmatprep.subr.mxu0 0.0
    %673 = vmatpush2.msra.mxu0 0.0
    %674 = vmatprep.subr.mxu0 0.0
    %675 = vmatpush2.msra.mxu0 0.0
    %676 = vmatprep.subr.mxu0 0.0
    %677 = vmatpush2.msra.mxu0 0.0
    %678 = vmatprep.subr.mxu0 0.0
    %679 = vmatpush2.msra.mxu0 0.0
    %680 = vmatprep.subr.mxu0 0.0
    %681 = vmatpush2.msra.mxu0 0.0
    %682 = vmatprep.subr.mxu0 0.0
    %683 = vmatpush2.msra.mxu0 0.0
    %684 = vmatprep.subr.mxu0 0.0
    %685 = vmatpush2.msra.mxu0 0.0
    %686 = vmatprep.subr.mxu0 0.0
    %687 = vmatpush2.msra.mxu0 0.0
    %688 = vmatprep.subr.mxu0 0.0
    %689 = vmatpush2.msra.mxu0 0.0
    %690 = vmatprep.subr.mxu0 0.0
    %691 = vmatpush2.msra.mxu0 0.0
    %692 = vmatprep.subr.mxu0 0.0
    %693 = vmatpush2.msra.mxu0 0.0
    %694 = vmatprep.subr.mxu0 0.0
    %695 = vmatpush2.msra.mxu0 0.0
    %696 = vmatprep.subr.mxu0 0.0
    %697 = vmatpush2.msra.mxu0 0.0
    %698 = vmatprep.subr.mxu0 0.0
    %699 = vmatpush2.msra.mxu0 0.0
    %700 = vmatprep.subr.mxu0 0.0
    %701 = vmatpush2.msra.mxu0 0.0
    %702 = vmatprep.mubr.f32.mxu0 0.0
    %703 = vmatmul.mubr.f32.gmra.mxu0 %v634
    %v704 = vpop.f32.mrf.mxu0
    %v705 = vadd.f32 0.0, %v704
    %v706 = vpop.f32.mrf.mxu0
    %707 = vdwg.mxu0
    %v708 = vadd.f32 %v637, %v705
    %v709 = vtanh.pop %v708
    %710 = vst [vmem:[%s636] sm:$0xff] %v709
    %s711 = scalar_lea.vmem [#allocation2], 48
    %v712 = vld [vmem:[%s711] sm:$0xff]
    %713 = vmatprep.subr.mxu0 0.0
    %714 = vmatpush1.msra.mxu0 %v105
    %715 = vmatprep.subr.mxu0 0.0
    %716 = vmatpush1.msra.mxu0 %v104
    %717 = vmatprep.subr.mxu0 0.0
    %718 = vmatpush1.msra.mxu0 %v103
    %719 = vmatprep.subr.mxu0 0.0
    %720 = vmatpush1.msra.mxu0 %v102
    %721 = vmatprep.subr.mxu0 0.0
    %722 = vmatpush1.msra.mxu0 %v101
    %723 = vmatprep.subr.mxu0 0.0
    %724 = vmatpush1.msra.mxu0 %v100
    %725 = vmatprep.subr.mxu0 0.0
    %726 = vmatpush1.msra.mxu0 %v99
    %727 = vmatprep.subr.mxu0 0.0
    %728 = vmatpush1.msra.mxu0 %v98
    %729 = vmatprep.subr.mxu0 0.0
    %730 = vmatpush1.msra.mxu0 %v97
    %731 = vmatprep.subr.mxu0 0.0
    %732 = vmatpush1.msra.mxu0 %v96
    %733 = vmatprep.subr.mxu0 0.0
    %734 = vmatpush1.msra.mxu0 %v95
    %735 = vmatprep.subr.mxu0 0.0
    %736 = vmatpush1.msra.mxu0 %v94
    %737 = vmatprep.subr.mxu0 0.0
    %738 = vmatpush1.msra.mxu0 %v93
    %739 = vmatprep.subr.mxu0 0.0
    %740 = vmatpush1.msra.mxu0 %v92
    %741 = vmatprep.subr.mxu0 0.0
    %742 = vmatpush1.msra.mxu0 %v91
    %743 = vmatprep.subr.mxu0 0.0
    %744 = vmatpush1.msra.mxu0 %v90
    %745 = vmatprep.subr.mxu0 0.0
    %746 = vmatpush2.msra.mxu0 0.0
    %747 = vmatprep.subr.mxu0 0.0
    %748 = vmatpush2.msra.mxu0 0.0
    %749 = vmatprep.subr.mxu0 0.0
    %750 = vmatpush2.msra.mxu0 0.0
    %751 = vmatprep.subr.mxu0 0.0
    %752 = vmatpush2.msra.mxu0 0.0
    %753 = vmatprep.subr.mxu0 0.0
    %754 = vmatpush2.msra.mxu0 0.0
    %755 = vmatprep.subr.mxu0 0.0
    %756 = vmatpush2.msra.mxu0 0.0
    %757 = vmatprep.subr.mxu0 0.0
    %758 = vmatpush2.msra.mxu0 0.0
    %759 = vmatprep.subr.mxu0 0.0
    %760 = vmatpush2.msra.mxu0 0.0
    %761 = vmatprep.subr.mxu0 0.0
    %762 = vmatpush2.msra.mxu0 0.0
    %763 = vmatprep.subr.mxu0 0.0
    %764 = vmatpush2.msra.mxu0 0.0
    %765 = vmatprep.subr.mxu0 0.0
    %766 = vmatpush2.msra.mxu0 0.0
    %767 = vmatprep.subr.mxu0 0.0
    %768 = vmatpush2.msra.mxu0 0.0
    %769 = vmatprep.subr.mxu0 0.0
    %770 = vmatpush2.msra.mxu0 0.0
    %771 = vmatprep.subr.mxu0 0.0
    %772 = vmatpush2.msra.mxu0 0.0
    %773 = vmatprep.subr.mxu0 0.0
    %774 = vmatpush2.msra.mxu0 0.0
    %775 = vmatprep.subr.mxu0 0.0
    %776 = vmatpush2.msra.mxu0 0.0
    %777 = vmatprep.mubr.f32.mxu0 0.0
    %778 = vmatmul.mubr.f32.gmra.mxu0 %v709
    %v779 = vpop.f32.mrf.mxu0
    %v780 = vadd.f32 0.0, %v779
    %v781 = vpop.f32.mrf.mxu0
    %782 = vdwg.mxu0
    %v783 = vadd.f32 %v712, %v780
    %v784 = vtanh.pop %v783
    %785 = vst [vmem:[%s711] sm:$0xff] %v784
    %s786 = scalar_lea.vmem [#allocation2], 56
    %v787 = vld [vmem:[%s786] sm:$0xff]
    %788 = vmatprep.subr.mxu0 0.0
    %789 = vmatpush1.msra.mxu0 %v105
    %790 = vmatprep.subr.mxu0 0.0
    %791 = vmatpush1.msra.mxu0 %v104
    %792 = vmatprep.subr.mxu0 0.0
    %793 = vmatpush1.msra.mxu0 %v103
    %794 = vmatprep.subr.mxu0 0.0
    %795 = vmatpush1.msra.mxu0 %v102
    %796 = vmatprep.subr.mxu0 0.0
    %797 = vmatpush1.msra.mxu0 %v101
    %798 = vmatprep.subr.mxu0 0.0
    %799 = vmatpush1.msra.mxu0 %v100
    %800 = vmatprep.subr.mxu0 0.0
    %801 = vmatpush1.msra.mxu0 %v99
    %802 = vmatprep.subr.mxu0 0.0
    %803 = vmatpush1.msra.mxu0 %v98
    %804 = vmatprep.subr.mxu0 0.0
    %805 = vmatpush1.msra.mxu0 %v97
    %806 = vmatprep.subr.mxu0 0.0
    %807 = vmatpush1.msra.mxu0 %v96
    %808 = vmatprep.subr.mxu0 0.0
    %809 = vmatpush1.msra.mxu0 %v95
    %810 = vmatprep.subr.mxu0 0.0
    %811 = vmatpush1.msra.mxu0 %v94
    %812 = vmatprep.subr.mxu0 0.0
    %813 = vmatpush1.msra.mxu0 %v93
    %814 = vmatprep.subr.mxu0 0.0
    %815 = vmatpush1.msra.mxu0 %v92
    %816 = vmatprep.subr.mxu0 0.0
    %817 = vmatpush1.msra.mxu0 %v91
    %818 = vmatprep.subr.mxu0 0.0
    %819 = vmatpush1.msra.mxu0 %v90
    %820 = vmatprep.subr.mxu0 0.0
    %821 = vmatpush2.msra.mxu0 0.0
    %822 = vmatprep.subr.mxu0 0.0
    %823 = vmatpush2.msra.mxu0 0.0
    %824 = vmatprep.subr.mxu0 0.0
    %825 = vmatpush2.msra.mxu0 0.0
    %826 = vmatprep.subr.mxu0 0.0
    %827 = vmatpush2.msra.mxu0 0.0
    %828 = vmatprep.subr.mxu0 0.0
    %829 = vmatpush2.msra.mxu0 0.0
    %830 = vmatprep.subr.mxu0 0.0
    %831 = vmatpush2.msra.mxu0 0.0
    %832 = vmatprep.subr.mxu0 0.0
    %833 = vmatpush2.msra.mxu0 0.0
    %834 = vmatprep.subr.mxu0 0.0
    %835 = vmatpush2.msra.mxu0 0.0
    %836 = vmatprep.subr.mxu0 0.0
    %837 = vmatpush2.msra.mxu0 0.0
    %838 = vmatprep.subr.mxu0 0.0
    %839 = vmatpush2.msra.mxu0 0.0
    %840 = vmatprep.subr.mxu0 0.0
    %841 = vmatpush2.msra.mxu0 0.0
    %842 = vmatprep.subr.mxu0 0.0
    %843 = vmatpush2.msra.mxu0 0.0
    %844 = vmatprep.subr.mxu0 0.0
    %845 = vmatpush2.msra.mxu0 0.0
    %846 = vmatprep.subr.mxu0 0.0
    %847 = vmatpush2.msra.mxu0 0.0
    %848 = vmatprep.subr.mxu0 0.0
    %849 = vmatpush2.msra.mxu0 0.0
    %850 = vmatprep.subr.mxu0 0.0
    %851 = vmatpush2.msra.mxu0 0.0
    %852 = vmatprep.mubr.f32.mxu0 0.0
    %853 = vmatmul.mubr.f32.gmra.mxu0 %v784
    %v854 = vpop.f32.mrf.mxu0
    %v855 = vadd.f32 0.0, %v854
    %v856 = vpop.f32.mrf.mxu0
    %857 = vdwg.mxu0
    %v858 = vadd.f32 %v787, %v855
    %v859 = vtanh.pop %v858
    %860 = vst [vmem:[%s786] sm:$0xff] %v859
    %v861 = vld [vmem:[%s6] sm:$0x1]
    %v862 = vld [vmem:[#allocation7] sm:$0xff]
    %v863 = vld [vmem:[#allocation7 + $0x8] sm:$0xff]
    %v864 = vld [vmem:[#allocation7 + $0x10] sm:$0xff]
    %v865 = vld [vmem:[#allocation7 + $0x18] sm:$0xff]
    %v866 = vld [vmem:[#allocation7 + $0x20] sm:$0xff]
    %v867 = vld [vmem:[#allocation7 + $0x28] sm:$0xff]
    %v868 = vld [vmem:[#allocation7 + $0x30] sm:$0xff]
    %v869 = vld [vmem:[#allocation7 + $0x38] sm:$0xff]
    %v870 = vld [vmem:[#allocation7 + $0x40] sm:$0xff]
    %v871 = vld [vmem:[#allocation7 + $0x48] sm:$0xff]
    %v872 = vld [vmem:[#allocation7 + $0x50] sm:$0xff]
    %v873 = vld [vmem:[#allocation7 + $0x58] sm:$0xff]
    %v874 = vld [vmem:[#allocation7 + $0x60] sm:$0xff]
    %v875 = vld [vmem:[#allocation7 + $0x68] sm:$0xff]
    %v876 = vld [vmem:[#allocation7 + $0x70] sm:$0xff]
    %v877 = vld [vmem:[#allocation7 + $0x78] sm:$0xff]
    %v878 = vld [vmem:[#allocation9] sm:$0xff]
    %v879 = vld [vmem:[#allocation9 + $0x8] sm:$0xff]
    %v880 = vld [vmem:[#allocation9 + $0x10] sm:$0xff]
    %v881 = vld [vmem:[#allocation9 + $0x18] sm:$0xff]
    %v882 = vld [vmem:[#allocation9 + $0x20] sm:$0xff]
    %v883 = vld [vmem:[#allocation9 + $0x28] sm:$0xff]
    %v884 = vld [vmem:[#allocation9 + $0x30] sm:$0xff]
    %v885 = vld [vmem:[#allocation9 + $0x38] sm:$0xff]
    %v886 = vld [vmem:[#allocation9 + $0x40] sm:$0xff]
    %v887 = vld [vmem:[#allocation9 + $0x48] sm:$0xff]
    %v888 = vld [vmem:[#allocation9 + $0x50] sm:$0xff]
    %v889 = vld [vmem:[#allocation9 + $0x58] sm:$0xff]
    %v890 = vld [vmem:[#allocation9 + $0x60] sm:$0xff]
    %v891 = vld [vmem:[#allocation9 + $0x68] sm:$0xff]
    %v892 = vld [vmem:[#allocation9 + $0x70] sm:$0xff]
    %v893 = vld [vmem:[#allocation9 + $0x78] sm:$0xff]
    %v894 = vld [vmem:[#allocation2] sm:$0xff]
    %v895 = vld [vmem:[#allocation2 + $0x8] sm:$0xff]
    %v896 = vld [vmem:[#allocation2 + $0x10] sm:$0xff]
    %v897 = vld [vmem:[#allocation2 + $0x18] sm:$0xff]
    %v898 = vld [vmem:[#allocation2 + $0x20] sm:$0xff]
    %v899 = vld [vmem:[#allocation2 + $0x28] sm:$0xff]
    %v900 = vld [vmem:[#allocation2 + $0x30] sm:$0xff]
    %v901 = vld [vmem:[#allocation2 + $0x38] sm:$0xff]
    %v903 = vlaneseq
    %v904 = vshrl.u32 %v903, 7
    %v905 = vsub.s32 0, %v904
    %v906 = vrot.slane %v861, %v905
    %908 = vmatprep.subr.mxu0 0.0
    %909 = vmatpush1.msra.mxu0 %v877
    %910 = vmatprep.subr.mxu0 0.0
    %911 = vmatpush1.msra.mxu0 %v876
    %912 = vmatprep.subr.mxu0 0.0
    %913 = vmatpush1.msra.mxu0 %v875
    %914 = vmatprep.subr.mxu0 0.0
    %915 = vmatpush1.msra.mxu0 %v874
    %916 = vmatprep.subr.mxu0 0.0
    %917 = vmatpush1.msra.mxu0 %v873
    %918 = vmatprep.subr.mxu0 0.0
    %919 = vmatpush1.msra.mxu0 %v872
    %920 = vmatprep.subr.mxu0 0.0
    %921 = vmatpush1.msra.mxu0 %v871
    %922 = vmatprep.subr.mxu0 0.0
    %923 = vmatpush1.msra.mxu0 %v870
    %924 = vmatprep.subr.mxu0 0.0
    %925 = vmatpush1.msra.mxu0 %v869
    %926 = vmatprep.subr.mxu0 0.0
    %927 = vmatpush1.msra.mxu0 %v868
    %928 = vmatprep.subr.mxu0 0.0
    %929 = vmatpush1.msra.mxu0 %v867
    %930 = vmatprep.subr.mxu0 0.0
    %931 = vmatpush1.msra.mxu0 %v866
    %932 = vmatprep.subr.mxu0 0.0
    %933 = vmatpush1.msra.mxu0 %v865
    %934 = vmatprep.subr.mxu0 0.0
    %935 = vmatpush1.msra.mxu0 %v864
    %936 = vmatprep.subr.mxu0 0.0
    %937 = vmatpush1.msra.mxu0 %v863
    %938 = vmatprep.subr.mxu0 0.0
    %939 = vmatpush1.msra.mxu0 %v862
    %940 = vmatprep.subr.mxu0 0.0
    %941 = vmatpush2.msra.mxu0 0.0
    %942 = vmatprep.subr.mxu0 0.0
    %943 = vmatpush2.msra.mxu0 0.0
    %944 = vmatprep.subr.mxu0 0.0
    %945 = vmatpush2.msra.mxu0 0.0
    %946 = vmatprep.subr.mxu0 0.0
    %947 = vmatpush2.msra.mxu0 0.0
    %948 = vmatprep.subr.mxu0 0.0
    %949 = vmatpush2.msra.mxu0 0.0
    %950 = vmatprep.subr.mxu0 0.0
    %951 = vmatpush2.msra.mxu0 0.0
    %952 = vmatprep.subr.mxu0 0.0
    %953 = vmatpush2.msra.mxu0 0.0
    %954 = vmatprep.subr.mxu0 0.0
    %955 = vmatpush2.msra.mxu0 0.0
    %956 = vmatprep.subr.mxu0 0.0
    %957 = vmatpush2.msra.mxu0 0.0
    %958 = vmatprep.subr.mxu0 0.0
    %959 = vmatpush2.msra.mxu0 0.0
    %960 = vmatprep.subr.mxu0 0.0
    %961 = vmatpush2.msra.mxu0 0.0
    %962 = vmatprep.subr.mxu0 0.0
    %963 = vmatpush2.msra.mxu0 0.0
    %964 = vmatprep.subr.mxu0 0.0
    %965 = vmatpush2.msra.mxu0 0.0
    %966 = vmatprep.subr.mxu0 0.0
    %967 = vmatpush2.msra.mxu0 0.0
    %968 = vmatprep.subr.mxu0 0.0
    %969 = vmatpush2.msra.mxu0 0.0
    %970 = vmatprep.subr.mxu0 0.0
    %971 = vmatpush2.msra.mxu0 0.0
    %972 = vmatprep.mubr.f32.mxu0 0.0
    %973 = vmatmul.mubr.f32.gmra.mxu0 %v894
    %v974 = vpop.f32.mrf.mxu0
    %v975 = vadd.f32 %v906, %v974
    %v976 = vpop.f32.mrf.mxu0
    %977 = vmatprep.mubr.f32.mxu0 0.0
    %978 = vmatmul.mubr.f32.gmra.mxu0 %v895
    %v979 = vpop.f32.mrf.mxu0
    %v980 = vadd.f32 %v906, %v979
    %v981 = vpop.f32.mrf.mxu0
    %982 = vmatprep.mubr.f32.mxu0 0.0
    %983 = vmatmul.mubr.f32.gmra.mxu0 %v896
    %v984 = vpop.f32.mrf.mxu0
    %v985 = vadd.f32 %v906, %v984
    %v986 = vpop.f32.mrf.mxu0
    %987 = vmatprep.mubr.f32.mxu0 0.0
    %988 = vmatmul.mubr.f32.gmra.mxu0 %v897
    %v989 = vpop.f32.mrf.mxu0
    %v990 = vadd.f32 %v906, %v989
    %v991 = vpop.f32.mrf.mxu0
    %992 = vmatprep.mubr.f32.mxu0 0.0
    %993 = vmatmul.mubr.f32.gmra.mxu0 %v898
    %v994 = vpop.f32.mrf.mxu0
    %v995 = vadd.f32 %v906, %v994
    %v996 = vpop.f32.mrf.mxu0
    %997 = vmatprep.mubr.f32.mxu0 0.0
    %998 = vmatmul.mubr.f32.gmra.mxu0 %v899
    %v999 = vpop.f32.mrf.mxu0
    %v1000 = vadd.f32 %v906, %v999
    %v1001 = vpop.f32.mrf.mxu0
    %1002 = vmatprep.mubr.f32.mxu0 0.0
    %1003 = vmatmul.mubr.f32.gmra.mxu0 %v900
    %v1004 = vpop.f32.mrf.mxu0
    %v1005 = vadd.f32 %v906, %v1004
    %v1006 = vpop.f32.mrf.mxu0
    %1007 = vmatprep.mubr.f32.mxu0 0.0
    %1008 = vmatmul.mubr.f32.gmra.mxu0 %v901
    %v1009 = vpop.f32.mrf.mxu0
    %v1010 = vadd.f32 %v906, %v1009
    %v1011 = vpop.f32.mrf.mxu0
    %1012 = vdwg.mxu0
    %1013 = vst [vmem:[#allocation3] sm:$0xff] %v975
    %1014 = vst [vmem:[#allocation3 + $0x8] sm:$0xff] %v980
    %1015 = vst [vmem:[#allocation3 + $0x10] sm:$0xff] %v985
    %1016 = vst [vmem:[#allocation3 + $0x18] sm:$0xff] %v990
    %1017 = vst [vmem:[#allocation3 + $0x20] sm:$0xff] %v995
    %1018 = vst [vmem:[#allocation3 + $0x28] sm:$0xff] %v1000
    %1019 = vst [vmem:[#allocation3 + $0x30] sm:$0xff] %v1005
    %1020 = vst [vmem:[#allocation3 + $0x38] sm:$0xff] %v1010
    %v1021 = vld [vmem:[#allocation3] sm:$0xff]
    %1022 = vmatprep.subr.mxu0 0.0
    %1023 = vmatpush1.msra.mxu0 %v893
    %1024 = vmatprep.subr.mxu0 0.0
    %1025 = vmatpush1.msra.mxu0 %v892
    %1026 = vmatprep.subr.mxu0 0.0
    %1027 = vmatpush1.msra.mxu0 %v891
    %1028 = vmatprep.subr.mxu0 0.0
    %1029 = vmatpush1.msra.mxu0 %v890
    %1030 = vmatprep.subr.mxu0 0.0
    %1031 = vmatpush1.msra.mxu0 %v889
    %1032 = vmatprep.subr.mxu0 0.0
    %1033 = vmatpush1.msra.mxu0 %v888
    %1034 = vmatprep.subr.mxu0 0.0
    %1035 = vmatpush1.msra.mxu0 %v887
    %1036 = vmatprep.subr.mxu0 0.0
    %1037 = vmatpush1.msra.mxu0 %v886
    %1038 = vmatprep.subr.mxu0 0.0
    %1039 = vmatpush1.msra.mxu0 %v885
    %1040 = vmatprep.subr.mxu0 0.0
    %1041 = vmatpush1.msra.mxu0 %v884
    %1042 = vmatprep.subr.mxu0 0.0
    %1043 = vmatpush1.msra.mxu0 %v883
    %1044 = vmatprep.subr.mxu0 0.0
    %1045 = vmatpush1.msra.mxu0 %v882
    %1046 = vmatprep.subr.mxu0 0.0
    %1047 = vmatpush1.msra.mxu0 %v881
    %1048 = vmatprep.subr.mxu0 0.0
    %1049 = vmatpush1.msra.mxu0 %v880
    %1050 = vmatprep.subr.mxu0 0.0
    %1051 = vmatpush1.msra.mxu0 %v879
    %1052 = vmatprep.subr.mxu0 0.0
    %1053 = vmatpush1.msra.mxu0 %v878
    %1054 = vmatprep.subr.mxu0 0.0
    %1055 = vmatpush2.msra.mxu0 0.0
    %1056 = vmatprep.subr.mxu0 0.0
    %1057 = vmatpush2.msra.mxu0 0.0
    %1058 = vmatprep.subr.mxu0 0.0
    %1059 = vmatpush2.msra.mxu0 0.0
    %1060 = vmatprep.subr.mxu0 0.0
    %1061 = vmatpush2.msra.mxu0 0.0
    %1062 = vmatprep.subr.mxu0 0.0
    %1063 = vmatpush2.msra.mxu0 0.0
    %1064 = vmatprep.subr.mxu0 0.0
    %1065 = vmatpush2.msra.mxu0 0.0
    %1066 = vmatprep.subr.mxu0 0.0
    %1067 = vmatpush2.msra.mxu0 0.0
    %1068 = vmatprep.subr.mxu0 0.0
    %1069 = vmatpush2.msra.mxu0 0.0
    %1070 = vmatprep.subr.mxu0 0.0
    %1071 = vmatpush2.msra.mxu0 0.0
    %1072 = vmatprep.subr.mxu0 0.0
    %1073 = vmatpush2.msra.mxu0 0.0
    %1074 = vmatprep.subr.mxu0 0.0
    %1075 = vmatpush2.msra.mxu0 0.0
    %1076 = vmatprep.subr.mxu0 0.0
    %1077 = vmatpush2.msra.mxu0 0.0
    %1078 = vmatprep.subr.mxu0 0.0
    %1079 = vmatpush2.msra.mxu0 0.0
    %1080 = vmatprep.subr.mxu0 0.0
    %1081 = vmatpush2.msra.mxu0 0.0
    %1082 = vmatprep.subr.mxu0 0.0
    %1083 = vmatpush2.msra.mxu0 0.0
    %1084 = vmatprep.subr.mxu0 0.0
    %1085 = vmatpush2.msra.mxu0 0.0
    %1086 = vmatprep.mubr.f32.mxu0 0.0
    %1087 = vmatmul.mubr.f32.gmra.mxu0 0.0
    %v1088 = vpop.f32.mrf.mxu0
    %v1089 = vadd.f32 0.0, %v1088
    %v1090 = vpop.f32.mrf.mxu0
    %1091 = vdwg.mxu0
    %v1092 = vadd.f32 %v1021, %v1089
    %v1093 = vtanh.pop %v1092
    %s1094 = scalar_lea.vmem [#allocation3], 8
    %v1095 = vld [vmem:[%s1094] sm:$0xff]
    %1096 = vmatprep.subr.mxu0 0.0
    %1097 = vmatpush1.msra.mxu0 %v893
    %1098 = vmatprep.subr.mxu0 0.0
    %1099 = vmatpush1.msra.mxu0 %v892
    %1100 = vmatprep.subr.mxu0 0.0
    %1101 = vmatpush1.msra.mxu0 %v891
    %1102 = vmatprep.subr.mxu0 0.0
    %1103 = vmatpush1.msra.mxu0 %v890
    %1104 = vmatprep.subr.mxu0 0.0
    %1105 = vmatpush1.msra.mxu0 %v889
    %1106 = vmatprep.subr.mxu0 0.0
    %1107 = vmatpush1.msra.mxu0 %v888
    %1108 = vmatprep.subr.mxu0 0.0
    %1109 = vmatpush1.msra.mxu0 %v887
    %1110 = vmatprep.subr.mxu0 0.0
    %1111 = vmatpush1.msra.mxu0 %v886
    %1112 = vmatprep.subr.mxu0 0.0
    %1113 = vmatpush1.msra.mxu0 %v885
    %1114 = vmatprep.subr.mxu0 0.0
    %1115 = vmatpush1.msra.mxu0 %v884
    %1116 = vmatprep.subr.mxu0 0.0
    %1117 = vmatpush1.msra.mxu0 %v883
    %1118 = vmatprep.subr.mxu0 0.0
    %1119 = vmatpush1.msra.mxu0 %v882
    %1120 = vmatprep.subr.mxu0 0.0
    %1121 = vmatpush1.msra.mxu0 %v881
    %1122 = vmatprep.subr.mxu0 0.0
    %1123 = vmatpush1.msra.mxu0 %v880
    %1124 = vmatprep.subr.mxu0 0.0
    %1125 = vmatpush1.msra.mxu0 %v879
    %1126 = vmatprep.subr.mxu0 0.0
    %1127 = vmatpush1.msra.mxu0 %v878
    %1128 = vmatprep.subr.mxu0 0.0
    %1129 = vmatpush2.msra.mxu0 0.0
    %1130 = vmatprep.subr.mxu0 0.0
    %1131 = vmatpush2.msra.mxu0 0.0
    %1132 = vmatprep.subr.mxu0 0.0
    %1133 = vmatpush2.msra.mxu0 0.0
    %1134 = vmatprep.subr.mxu0 0.0
    %1135 = vmatpush2.msra.mxu0 0.0
    %1136 = vmatprep.subr.mxu0 0.0
    %1137 = vmatpush2.msra.mxu0 0.0
    %1138 = vmatprep.subr.mxu0 0.0
    %1139 = vmatpush2.msra.mxu0 0.0
    %1140 = vmatprep.subr.mxu0 0.0
    %1141 = vmatpush2.msra.mxu0 0.0
    %1142 = vmatprep.subr.mxu0 0.0
    %1143 = vmatpush2.msra.mxu0 0.0
    %1144 = vmatprep.subr.mxu0 0.0
    %1145 = vmatpush2.msra.mxu0 0.0
    %1146 = vmatprep.subr.mxu0 0.0
    %1147 = vmatpush2.msra.mxu0 0.0
    %1148 = vmatprep.subr.mxu0 0.0
    %1149 = vmatpush2.msra.mxu0 0.0
    %1150 = vmatprep.subr.mxu0 0.0
    %1151 = vmatpush2.msra.mxu0 0.0
    %1152 = vmatprep.subr.mxu0 0.0
    %1153 = vmatpush2.msra.mxu0 0.0
    %1154 = vmatprep.subr.mxu0 0.0
    %1155 = vmatpush2.msra.mxu0 0.0
    %1156 = vmatprep.subr.mxu0 0.0
    %1157 = vmatpush2.msra.mxu0 0.0
    %1158 = vmatprep.subr.mxu0 0.0
    %1159 = vmatpush2.msra.mxu0 0.0
    %1160 = vmatprep.mubr.f32.mxu0 0.0
    %1161 = vmatmul.mubr.f32.gmra.mxu0 %v1093
    %v1162 = vpop.f32.mrf.mxu0
    %v1163 = vadd.f32 0.0, %v1162
    %v1164 = vpop.f32.mrf.mxu0
    %1165 = vdwg.mxu0
    %v1166 = vadd.f32 %v1095, %v1163
    %v1167 = vtanh.pop %v1166
    %s1168 = scalar_lea.vmem [#allocation3], 16
    %v1169 = vld [vmem:[%s1168] sm:$0xff]
    %1170 = vmatprep.subr.mxu0 0.0
    %1171 = vmatpush1.msra.mxu0 %v893
    %1172 = vmatprep.subr.mxu0 0.0
    %1173 = vmatpush1.msra.mxu0 %v892
    %1174 = vmatprep.subr.mxu0 0.0
    %1175 = vmatpush1.msra.mxu0 %v891
    %1176 = vmatprep.subr.mxu0 0.0
    %1177 = vmatpush1.msra.mxu0 %v890
    %1178 = vmatprep.subr.mxu0 0.0
    %1179 = vmatpush1.msra.mxu0 %v889
    %1180 = vmatprep.subr.mxu0 0.0
    %1181 = vmatpush1.msra.mxu0 %v888
    %1182 = vmatprep.subr.mxu0 0.0
    %1183 = vmatpush1.msra.mxu0 %v887
    %1184 = vmatprep.subr.mxu0 0.0
    %1185 = vmatpush1.msra.mxu0 %v886
    %1186 = vmatprep.subr.mxu0 0.0
    %1187 = vmatpush1.msra.mxu0 %v885
    %1188 = vmatprep.subr.mxu0 0.0
    %1189 = vmatpush1.msra.mxu0 %v884
    %1190 = vmatprep.subr.mxu0 0.0
    %1191 = vmatpush1.msra.mxu0 %v883
    %1192 = vmatprep.subr.mxu0 0.0
    %1193 = vmatpush1.msra.mxu0 %v882
    %1194 = vmatprep.subr.mxu0 0.0
    %1195 = vmatpush1.msra.mxu0 %v881
    %1196 = vmatprep.subr.mxu0 0.0
    %1197 = vmatpush1.msra.mxu0 %v880
    %1198 = vmatprep.subr.mxu0 0.0
    %1199 = vmatpush1.msra.mxu0 %v879
    %1200 = vmatprep.subr.mxu0 0.0
    %1201 = vmatpush1.msra.mxu0 %v878
    %1202 = vmatprep.subr.mxu0 0.0
    %1203 = vmatpush2.msra.mxu0 0.0
    %1204 = vmatprep.subr.mxu0 0.0
    %1205 = vmatpush2.msra.mxu0 0.0
    %1206 = vmatprep.subr.mxu0 0.0
    %1207 = vmatpush2.msra.mxu0 0.0
    %1208 = vmatprep.subr.mxu0 0.0
    %1209 = vmatpush2.msra.mxu0 0.0
    %1210 = vmatprep.subr.mxu0 0.0
    %1211 = vmatpush2.msra.mxu0 0.0
    %1212 = vmatprep.subr.mxu0 0.0
    %1213 = vmatpush2.msra.mxu0 0.0
    %1214 = vmatprep.subr.mxu0 0.0
    %1215 = vmatpush2.msra.mxu0 0.0
    %1216 = vmatprep.subr.mxu0 0.0
    %1217 = vmatpush2.msra.mxu0 0.0
    %1218 = vmatprep.subr.mxu0 0.0
    %1219 = vmatpush2.msra.mxu0 0.0
    %1220 = vmatprep.subr.mxu0 0.0
    %1221 = vmatpush2.msra.mxu0 0.0
    %1222 = vmatprep.subr.mxu0 0.0
    %1223 = vmatpush2.msra.mxu0 0.0
    %1224 = vmatprep.subr.mxu0 0.0
    %1225 = vmatpush2.msra.mxu0 0.0
    %1226 = vmatprep.subr.mxu0 0.0
    %1227 = vmatpush2.msra.mxu0 0.0
    %1228 = vmatprep.subr.mxu0 0.0
    %1229 = vmatpush2.msra.mxu0 0.0
    %1230 = vmatprep.subr.mxu0 0.0
    %1231 = vmatpush2.msra.mxu0 0.0
    %1232 = vmatprep.subr.mxu0 0.0
    %1233 = vmatpush2.msra.mxu0 0.0
    %1234 = vmatprep.mubr.f32.mxu0 0.0
    %1235 = vmatmul.mubr.f32.gmra.mxu0 %v1167
    %v1236 = vpop.f32.mrf.mxu0
    %v1237 = vadd.f32 0.0, %v1236
    %v1238 = vpop.f32.mrf.mxu0
    %1239 = vdwg.mxu0
    %v1240 = vadd.f32 %v1169, %v1237
    %v1241 = vtanh.pop %v1240
    %s1242 = scalar_lea.vmem [#allocation3], 24
    %v1243 = vld [vmem:[%s1242] sm:$0xff]
    %1244 = vmatprep.subr.mxu0 0.0
    %1245 = vmatpush1.msra.mxu0 %v893
    %1246 = vmatprep.subr.mxu0 0.0
    %1247 = vmatpush1.msra.mxu0 %v892
    %1248 = vmatprep.subr.mxu0 0.0
    %1249 = vmatpush1.msra.mxu0 %v891
    %1250 = vmatprep.subr.mxu0 0.0
    %1251 = vmatpush1.msra.mxu0 %v890
    %1252 = vmatprep.subr.mxu0 0.0
    %1253 = vmatpush1.msra.mxu0 %v889
    %1254 = vmatprep.subr.mxu0 0.0
    %1255 = vmatpush1.msra.mxu0 %v888
    %1256 = vmatprep.subr.mxu0 0.0
    %1257 = vmatpush1.msra.mxu0 %v887
    %1258 = vmatprep.subr.mxu0 0.0
    %1259 = vmatpush1.msra.mxu0 %v886
    %1260 = vmatprep.subr.mxu0 0.0
    %1261 = vmatpush1.msra.mxu0 %v885
    %1262 = vmatprep.subr.mxu0 0.0
    %1263 = vmatpush1.msra.mxu0 %v884
    %1264 = vmatprep.subr.mxu0 0.0
    %1265 = vmatpush1.msra.mxu0 %v883
    %1266 = vmatprep.subr.mxu0 0.0
    %1267 = vmatpush1.msra.mxu0 %v882
    %1268 = vmatprep.subr.mxu0 0.0
    %1269 = vmatpush1.msra.mxu0 %v881
    %1270 = vmatprep.subr.mxu0 0.0
    %1271 = vmatpush1.msra.mxu0 %v880
    %1272 = vmatprep.subr.mxu0 0.0
    %1273 = vmatpush1.msra.mxu0 %v879
    %1274 = vmatprep.subr.mxu0 0.0
    %1275 = vmatpush1.msra.mxu0 %v878
    %1276 = vmatprep.subr.mxu0 0.0
    %1277 = vmatpush2.msra.mxu0 0.0
    %1278 = vmatprep.subr.mxu0 0.0
    %1279 = vmatpush2.msra.mxu0 0.0
    %1280 = vmatprep.subr.mxu0 0.0
    %1281 = vmatpush2.msra.mxu0 0.0
    %1282 = vmatprep.subr.mxu0 0.0
    %1283 = vmatpush2.msra.mxu0 0.0
    %1284 = vmatprep.subr.mxu0 0.0
    %1285 = vmatpush2.msra.mxu0 0.0
    %1286 = vmatprep.subr.mxu0 0.0
    %1287 = vmatpush2.msra.mxu0 0.0
    %1288 = vmatprep.subr.mxu0 0.0
    %1289 = vmatpush2.msra.mxu0 0.0
    %1290 = vmatprep.subr.mxu0 0.0
    %1291 = vmatpush2.msra.mxu0 0.0
    %1292 = vmatprep.subr.mxu0 0.0
    %1293 = vmatpush2.msra.mxu0 0.0
    %1294 = vmatprep.subr.mxu0 0.0
    %1295 = vmatpush2.msra.mxu0 0.0
    %1296 = vmatprep.subr.mxu0 0.0
    %1297 = vmatpush2.msra.mxu0 0.0
    %1298 = vmatprep.subr.mxu0 0.0
    %1299 = vmatpush2.msra.mxu0 0.0
    %1300 = vmatprep.subr.mxu0 0.0
    %1301 = vmatpush2.msra.mxu0 0.0
    %1302 = vmatprep.subr.mxu0 0.0
    %1303 = vmatpush2.msra.mxu0 0.0
    %1304 = vmatprep.subr.mxu0 0.0
    %1305 = vmatpush2.msra.mxu0 0.0
    %1306 = vmatprep.subr.mxu0 0.0
    %1307 = vmatpush2.msra.mxu0 0.0
    %1308 = vmatprep.mubr.f32.mxu0 0.0
    %1309 = vmatmul.mubr.f32.gmra.mxu0 %v1241
    %v1310 = vpop.f32.mrf.mxu0
    %v1311 = vadd.f32 0.0, %v1310
    %v1312 = vpop.f32.mrf.mxu0
    %1313 = vdwg.mxu0
    %v1314 = vadd.f32 %v1243, %v1311
    %v1315 = vtanh.pop %v1314
    %s1316 = scalar_lea.vmem [#allocation3], 32
    %v1317 = vld [vmem:[%s1316] sm:$0xff]
    %1318 = vmatprep.subr.mxu0 0.0
    %1319 = vmatpush1.msra.mxu0 %v893
    %1320 = vmatprep.subr.mxu0 0.0
    %1321 = vmatpush1.msra.mxu0 %v892
    %1322 = vmatprep.subr.mxu0 0.0
    %1323 = vmatpush1.msra.mxu0 %v891
    %1324 = vmatprep.subr.mxu0 0.0
    %1325 = vmatpush1.msra.mxu0 %v890
    %1326 = vmatprep.subr.mxu0 0.0
    %1327 = vmatpush1.msra.mxu0 %v889
    %1328 = vmatprep.subr.mxu0 0.0
    %1329 = vmatpush1.msra.mxu0 %v888
    %1330 = vmatprep.subr.mxu0 0.0
    %1331 = vmatpush1.msra.mxu0 %v887
    %1332 = vmatprep.subr.mxu0 0.0
    %1333 = vmatpush1.msra.mxu0 %v886
    %1334 = vmatprep.subr.mxu0 0.0
    %1335 = vmatpush1.msra.mxu0 %v885
    %1336 = vmatprep.subr.mxu0 0.0
    %1337 = vmatpush1.msra.mxu0 %v884
    %1338 = vmatprep.subr.mxu0 0.0
    %1339 = vmatpush1.msra.mxu0 %v883
    %1340 = vmatprep.subr.mxu0 0.0
    %1341 = vmatpush1.msra.mxu0 %v882
    %1342 = vmatprep.subr.mxu0 0.0
    %1343 = vmatpush1.msra.mxu0 %v881
    %1344 = vmatprep.subr.mxu0 0.0
    %1345 = vmatpush1.msra.mxu0 %v880
    %1346 = vmatprep.subr.mxu0 0.0
    %1347 = vmatpush1.msra.mxu0 %v879
    %1348 = vmatprep.subr.mxu0 0.0
    %1349 = vmatpush1.msra.mxu0 %v878
    %1350 = vmatprep.subr.mxu0 0.0
    %1351 = vmatpush2.msra.mxu0 0.0
    %1352 = vmatprep.subr.mxu0 0.0
    %1353 = vmatpush2.msra.mxu0 0.0
    %1354 = vmatprep.subr.mxu0 0.0
    %1355 = vmatpush2.msra.mxu0 0.0
    %1356 = vmatprep.subr.mxu0 0.0
    %1357 = vmatpush2.msra.mxu0 0.0
    %1358 = vmatprep.subr.mxu0 0.0
    %1359 = vmatpush2.msra.mxu0 0.0
    %1360 = vmatprep.subr.mxu0 0.0
    %1361 = vmatpush2.msra.mxu0 0.0
    %1362 = vmatprep.subr.mxu0 0.0
    %1363 = vmatpush2.msra.mxu0 0.0
    %1364 = vmatprep.subr.mxu0 0.0
    %1365 = vmatpush2.msra.mxu0 0.0
    %1366 = vmatprep.subr.mxu0 0.0
    %1367 = vmatpush2.msra.mxu0 0.0
    %1368 = vmatprep.subr.mxu0 0.0
    %1369 = vmatpush2.msra.mxu0 0.0
    %1370 = vmatprep.subr.mxu0 0.0
    %1371 = vmatpush2.msra.mxu0 0.0
    %1372 = vmatprep.subr.mxu0 0.0
    %1373 = vmatpush2.msra.mxu0 0.0
    %1374 = vmatprep.subr.mxu0 0.0
    %1375 = vmatpush2.msra.mxu0 0.0
    %1376 = vmatprep.subr.mxu0 0.0
    %1377 = vmatpush2.msra.mxu0 0.0
    %1378 = vmatprep.subr.mxu0 0.0
    %1379 = vmatpush2.msra.mxu0 0.0
    %1380 = vmatprep.subr.mxu0 0.0
    %1381 = vmatpush2.msra.mxu0 0.0
    %1382 = vmatprep.mubr.f32.mxu0 0.0
    %1383 = vmatmul.mubr.f32.gmra.mxu0 %v1315
    %v1384 = vpop.f32.mrf.mxu0
    %v1385 = vadd.f32 0.0, %v1384
    %v1386 = vpop.f32.mrf.mxu0
    %1387 = vdwg.mxu0
    %v1388 = vadd.f32 %v1317, %v1385
    %v1389 = vtanh.pop %v1388
    %s1390 = scalar_lea.vmem [#allocation3], 40
    %v1391 = vld [vmem:[%s1390] sm:$0xff]
    %1392 = vmatprep.subr.mxu0 0.0
    %1393 = vmatpush1.msra.mxu0 %v893
    %1394 = vmatprep.subr.mxu0 0.0
    %1395 = vmatpush1.msra.mxu0 %v892
    %1396 = vmatprep.subr.mxu0 0.0
    %1397 = vmatpush1.msra.mxu0 %v891
    %1398 = vmatprep.subr.mxu0 0.0
    %1399 = vmatpush1.msra.mxu0 %v890
    %1400 = vmatprep.subr.mxu0 0.0
    %1401 = vmatpush1.msra.mxu0 %v889
    %1402 = vmatprep.subr.mxu0 0.0
    %1403 = vmatpush1.msra.mxu0 %v888
    %1404 = vmatprep.subr.mxu0 0.0
    %1405 = vmatpush1.msra.mxu0 %v887
    %1406 = vmatprep.subr.mxu0 0.0
    %1407 = vmatpush1.msra.mxu0 %v886
    %1408 = vmatprep.subr.mxu0 0.0
    %1409 = vmatpush1.msra.mxu0 %v885
    %1410 = vmatprep.subr.mxu0 0.0
    %1411 = vmatpush1.msra.mxu0 %v884
    %1412 = vmatprep.subr.mxu0 0.0
    %1413 = vmatpush1.msra.mxu0 %v883
    %1414 = vmatprep.subr.mxu0 0.0
    %1415 = vmatpush1.msra.mxu0 %v882
    %1416 = vmatprep.subr.mxu0 0.0
    %1417 = vmatpush1.msra.mxu0 %v881
    %1418 = vmatprep.subr.mxu0 0.0
    %1419 = vmatpush1.msra.mxu0 %v880
    %1420 = vmatprep.subr.mxu0 0.0
    %1421 = vmatpush1.msra.mxu0 %v879
    %1422 = vmatprep.subr.mxu0 0.0
    %1423 = vmatpush1.msra.mxu0 %v878
    %1424 = vmatprep.subr.mxu0 0.0
    %1425 = vmatpush2.msra.mxu0 0.0
    %1426 = vmatprep.subr.mxu0 0.0
    %1427 = vmatpush2.msra.mxu0 0.0
    %1428 = vmatprep.subr.mxu0 0.0
    %1429 = vmatpush2.msra.mxu0 0.0
    %1430 = vmatprep.subr.mxu0 0.0
    %1431 = vmatpush2.msra.mxu0 0.0
    %1432 = vmatprep.subr.mxu0 0.0
    %1433 = vmatpush2.msra.mxu0 0.0
    %1434 = vmatprep.subr.mxu0 0.0
    %1435 = vmatpush2.msra.mxu0 0.0
    %1436 = vmatprep.subr.mxu0 0.0
    %1437 = vmatpush2.msra.mxu0 0.0
    %1438 = vmatprep.subr.mxu0 0.0
    %1439 = vmatpush2.msra.mxu0 0.0
    %1440 = vmatprep.subr.mxu0 0.0
    %1441 = vmatpush2.msra.mxu0 0.0
    %1442 = vmatprep.subr.mxu0 0.0
    %1443 = vmatpush2.msra.mxu0 0.0
    %1444 = vmatprep.subr.mxu0 0.0
    %1445 = vmatpush2.msra.mxu0 0.0
    %1446 = vmatprep.subr.mxu0 0.0
    %1447 = vmatpush2.msra.mxu0 0.0
    %1448 = vmatprep.subr.mxu0 0.0
    %1449 = vmatpush2.msra.mxu0 0.0
    %1450 = vmatprep.subr.mxu0 0.0
    %1451 = vmatpush2.msra.mxu0 0.0
    %1452 = vmatprep.subr.mxu0 0.0
    %1453 = vmatpush2.msra.mxu0 0.0
    %1454 = vmatprep.subr.mxu0 0.0
    %1455 = vmatpush2.msra.mxu0 0.0
    %1456 = vmatprep.mubr.f32.mxu0 0.0
    %1457 = vmatmul.mubr.f32.gmra.mxu0 %v1389
    %v1458 = vpop.f32.mrf.mxu0
    %v1459 = vadd.f32 0.0, %v1458
    %v1460 = vpop.f32.mrf.mxu0
    %1461 = vdwg.mxu0
    %v1462 = vadd.f32 %v1391, %v1459
    %v1463 = vtanh.pop %v1462
    %s1464 = scalar_lea.vmem [#allocation3], 48
    %v1465 = vld [vmem:[%s1464] sm:$0xff]
    %1466 = vmatprep.subr.mxu0 0.0
    %1467 = vmatpush1.msra.mxu0 %v893
    %1468 = vmatprep.subr.mxu0 0.0
    %1469 = vmatpush1.msra.mxu0 %v892
    %1470 = vmatprep.subr.mxu0 0.0
    %1471 = vmatpush1.msra.mxu0 %v891
    %1472 = vmatprep.subr.mxu0 0.0
    %1473 = vmatpush1.msra.mxu0 %v890
    %1474 = vmatprep.subr.mxu0 0.0
    %1475 = vmatpush1.msra.mxu0 %v889
    %1476 = vmatprep.subr.mxu0 0.0
    %1477 = vmatpush1.msra.mxu0 %v888
    %1478 = vmatprep.subr.mxu0 0.0
    %1479 = vmatpush1.msra.mxu0 %v887
    %1480 = vmatprep.subr.mxu0 0.0
    %1481 = vmatpush1.msra.mxu0 %v886
    %1482 = vmatprep.subr.mxu0 0.0
    %1483 = vmatpush1.msra.mxu0 %v885
    %1484 = vmatprep.subr.mxu0 0.0
    %1485 = vmatpush1.msra.mxu0 %v884
    %1486 = vmatprep.subr.mxu0 0.0
    %1487 = vmatpush1.msra.mxu0 %v883
    %1488 = vmatprep.subr.mxu0 0.0
    %1489 = vmatpush1.msra.mxu0 %v882
    %1490 = vmatprep.subr.mxu0 0.0
    %1491 = vmatpush1.msra.mxu0 %v881
    %1492 = vmatprep.subr.mxu0 0.0
    %1493 = vmatpush1.msra.mxu0 %v880
    %1494 = vmatprep.subr.mxu0 0.0
    %1495 = vmatpush1.msra.mxu0 %v879
    %1496 = vmatprep.subr.mxu0 0.0
    %1497 = vmatpush1.msra.mxu0 %v878
    %1498 = vmatprep.subr.mxu0 0.0
    %1499 = vmatpush2.msra.mxu0 0.0
    %1500 = vmatprep.subr.mxu0 0.0
    %1501 = vmatpush2.msra.mxu0 0.0
    %1502 = vmatprep.subr.mxu0 0.0
    %1503 = vmatpush2.msra.mxu0 0.0
    %1504 = vmatprep.subr.mxu0 0.0
    %1505 = vmatpush2.msra.mxu0 0.0
    %1506 = vmatprep.subr.mxu0 0.0
    %1507 = vmatpush2.msra.mxu0 0.0
    %1508 = vmatprep.subr.mxu0 0.0
    %1509 = vmatpush2.msra.mxu0 0.0
    %1510 = vmatprep.subr.mxu0 0.0
    %1511 = vmatpush2.msra.mxu0 0.0
    %1512 = vmatprep.subr.mxu0 0.0
    %1513 = vmatpush2.msra.mxu0 0.0
    %1514 = vmatprep.subr.mxu0 0.0
    %1515 = vmatpush2.msra.mxu0 0.0
    %1516 = vmatprep.subr.mxu0 0.0
    %1517 = vmatpush2.msra.mxu0 0.0
    %1518 = vmatprep.subr.mxu0 0.0
    %1519 = vmatpush2.msra.mxu0 0.0
    %1520 = vmatprep.subr.mxu0 0.0
    %1521 = vmatpush2.msra.mxu0 0.0
    %1522 = vmatprep.subr.mxu0 0.0
    %1523 = vmatpush2.msra.mxu0 0.0
    %1524 = vmatprep.subr.mxu0 0.0
    %1525 = vmatpush2.msra.mxu0 0.0
    %1526 = vmatprep.subr.mxu0 0.0
    %1527 = vmatpush2.msra.mxu0 0.0
    %1528 = vmatprep.subr.mxu0 0.0
    %1529 = vmatpush2.msra.mxu0 0.0
    %1530 = vmatprep.mubr.f32.mxu0 0.0
    %1531 = vmatmul.mubr.f32.gmra.mxu0 %v1463
    %v1532 = vpop.f32.mrf.mxu0
    %v1533 = vadd.f32 0.0, %v1532
    %v1534 = vpop.f32.mrf.mxu0
    %1535 = vdwg.mxu0
    %v1536 = vadd.f32 %v1465, %v1533
    %v1537 = vtanh.pop %v1536
    %s1538 = scalar_lea.vmem [#allocation3], 56
    %v1539 = vld [vmem:[%s1538] sm:$0xff]
    %1540 = vmatprep.subr.mxu0 0.0
    %1541 = vmatpush1.msra.mxu0 %v893
    %1542 = vmatprep.subr.mxu0 0.0
    %1543 = vmatpush1.msra.mxu0 %v892
    %1544 = vmatprep.subr.mxu0 0.0
    %1545 = vmatpush1.msra.mxu0 %v891
    %1546 = vmatprep.subr.mxu0 0.0
    %1547 = vmatpush1.msra.mxu0 %v890
    %1548 = vmatprep.subr.mxu0 0.0
    %1549 = vmatpush1.msra.mxu0 %v889
    %1550 = vmatprep.subr.mxu0 0.0
    %1551 = vmatpush1.msra.mxu0 %v888
    %1552 = vmatprep.subr.mxu0 0.0
    %1553 = vmatpush1.msra.mxu0 %v887
    %1554 = vmatprep.subr.mxu0 0.0
    %1555 = vmatpush1.msra.mxu0 %v886
    %1556 = vmatprep.subr.mxu0 0.0
    %1557 = vmatpush1.msra.mxu0 %v885
    %1558 = vmatprep.subr.mxu0 0.0
    %1559 = vmatpush1.msra.mxu0 %v884
    %1560 = vmatprep.subr.mxu0 0.0
    %1561 = vmatpush1.msra.mxu0 %v883
    %1562 = vmatprep.subr.mxu0 0.0
    %1563 = vmatpush1.msra.mxu0 %v882
    %1564 = vmatprep.subr.mxu0 0.0
    %1565 = vmatpush1.msra.mxu0 %v881
    %1566 = vmatprep.subr.mxu0 0.0
    %1567 = vmatpush1.msra.mxu0 %v880
    %1568 = vmatprep.subr.mxu0 0.0
    %1569 = vmatpush1.msra.mxu0 %v879
    %1570 = vmatprep.subr.mxu0 0.0
    %1571 = vmatpush1.msra.mxu0 %v878
    %1572 = vmatprep.subr.mxu0 0.0
    %1573 = vmatpush2.msra.mxu0 0.0
    %1574 = vmatprep.subr.mxu0 0.0
    %1575 = vmatpush2.msra.mxu0 0.0
    %1576 = vmatprep.subr.mxu0 0.0
    %1577 = vmatpush2.msra.mxu0 0.0
    %1578 = vmatprep.subr.mxu0 0.0
    %1579 = vmatpush2.msra.mxu0 0.0
    %1580 = vmatprep.subr.mxu0 0.0
    %1581 = vmatpush2.msra.mxu0 0.0
    %1582 = vmatprep.subr.mxu0 0.0
    %1583 = vmatpush2.msra.mxu0 0.0
    %1584 = vmatprep.subr.mxu0 0.0
    %1585 = vmatpush2.msra.mxu0 0.0
    %1586 = vmatprep.subr.mxu0 0.0
    %1587 = vmatpush2.msra.mxu0 0.0
    %1588 = vmatprep.subr.mxu0 0.0
    %1589 = vmatpush2.msra.mxu0 0.0
    %1590 = vmatprep.subr.mxu0 0.0
    %1591 = vmatpush2.msra.mxu0 0.0
    %1592 = vmatprep.subr.mxu0 0.0
    %1593 = vmatpush2.msra.mxu0 0.0
    %1594 = vmatprep.subr.mxu0 0.0
    %1595 = vmatpush2.msra.mxu0 0.0
    %1596 = vmatprep.subr.mxu0 0.0
    %1597 = vmatpush2.msra.mxu0 0.0
    %1598 = vmatprep.subr.mxu0 0.0
    %1599 = vmatpush2.msra.mxu0 0.0
    %1600 = vmatprep.subr.mxu0 0.0
    %1601 = vmatpush2.msra.mxu0 0.0
    %1602 = vmatprep.subr.mxu0 0.0
    %1603 = vmatpush2.msra.mxu0 0.0
    %1604 = vmatprep.mubr.f32.mxu0 0.0
    %1605 = vmatmul.mubr.f32.gmra.mxu0 %v1537
    %v1606 = vpop.f32.mrf.mxu0
    %v1607 = vadd.f32 0.0, %v1606
    %v1608 = vpop.f32.mrf.mxu0
    %1609 = vdwg.mxu0
    %v1610 = vadd.f32 %v1539, %v1607
    %v1611 = vtanh.pop %v1610
    %v1612 = vld [vmem:[#allocation10] sm:$0xff]
    %v1613 = vld [vmem:[#allocation10 + $0x8] sm:$0xff]
    %v1614 = vld [vmem:[#allocation10 + $0x10] sm:$0xff]
    %v1615 = vld [vmem:[#allocation10 + $0x18] sm:$0xff]
    %v1616 = vld [vmem:[#allocation10 + $0x20] sm:$0xff]
    %v1617 = vld [vmem:[#allocation10 + $0x28] sm:$0xff]
    %v1618 = vld [vmem:[#allocation10 + $0x30] sm:$0xff]
    %v1619 = vld [vmem:[#allocation10 + $0x38] sm:$0xff]
    %v1620 = vld [vmem:[#allocation10 + $0x40] sm:$0xff]
    %v1621 = vld [vmem:[#allocation10 + $0x48] sm:$0xff]
    %v1622 = vld [vmem:[#allocation10 + $0x50] sm:$0xff]
    %v1623 = vld [vmem:[#allocation10 + $0x58] sm:$0xff]
    %v1624 = vld [vmem:[#allocation10 + $0x60] sm:$0xff]
    %v1625 = vld [vmem:[#allocation10 + $0x68] sm:$0xff]
    %v1626 = vld [vmem:[#allocation10 + $0x70] sm:$0xff]
    %v1627 = vld [vmem:[#allocation10 + $0x78] sm:$0xff]
    %v1628 = vld [vmem:[%s8] sm:$0x1]
    %v1630 = vlaneseq
    %v1631 = vshrl.u32 %v1630, 7
    %v1632 = vsub.s32 0, %v1631
    %v1633 = vrot.slane %v1628, %v1632
    %1635 = vmatprep.subr.mxu0 0.0
    %1636 = vmatpush1.msra.mxu0 %v1627
    %1637 = vmatprep.subr.mxu0 0.0
    %1638 = vmatpush1.msra.mxu0 %v1626
    %1639 = vmatprep.subr.mxu0 0.0
    %1640 = vmatpush1.msra.mxu0 %v1625
    %1641 = vmatprep.subr.mxu0 0.0
    %1642 = vmatpush1.msra.mxu0 %v1624
    %1643 = vmatprep.subr.mxu0 0.0
    %1644 = vmatpush1.msra.mxu0 %v1623
    %1645 = vmatprep.subr.mxu0 0.0
    %1646 = vmatpush1.msra.mxu0 %v1622
    %1647 = vmatprep.subr.mxu0 0.0
    %1648 = vmatpush1.msra.mxu0 %v1621
    %1649 = vmatprep.subr.mxu0 0.0
    %1650 = vmatpush1.msra.mxu0 %v1620
    %1651 = vmatprep.subr.mxu0 0.0
    %1652 = vmatpush1.msra.mxu0 %v1619
    %1653 = vmatprep.subr.mxu0 0.0
    %1654 = vmatpush1.msra.mxu0 %v1618
    %1655 = vmatprep.subr.mxu0 0.0
    %1656 = vmatpush1.msra.mxu0 %v1617
    %1657 = vmatprep.subr.mxu0 0.0
    %1658 = vmatpush1.msra.mxu0 %v1616
    %1659 = vmatprep.subr.mxu0 0.0
    %1660 = vmatpush1.msra.mxu0 %v1615
    %1661 = vmatprep.subr.mxu0 0.0
    %1662 = vmatpush1.msra.mxu0 %v1614
    %1663 = vmatprep.subr.mxu0 0.0
    %1664 = vmatpush1.msra.mxu0 %v1613
    %1665 = vmatprep.subr.mxu0 0.0
    %1666 = vmatpush1.msra.mxu0 %v1612
    %1667 = vmatprep.subr.mxu0 0.0
    %1668 = vmatpush2.msra.mxu0 0.0
    %1669 = vmatprep.subr.mxu0 0.0
    %1670 = vmatpush2.msra.mxu0 0.0
    %1671 = vmatprep.subr.mxu0 0.0
    %1672 = vmatpush2.msra.mxu0 0.0
    %1673 = vmatprep.subr.mxu0 0.0
    %1674 = vmatpush2.msra.mxu0 0.0
    %1675 = vmatprep.subr.mxu0 0.0
    %1676 = vmatpush2.msra.mxu0 0.0
    %1677 = vmatprep.subr.mxu0 0.0
    %1678 = vmatpush2.msra.mxu0 0.0
    %1679 = vmatprep.subr.mxu0 0.0
    %1680 = vmatpush2.msra.mxu0 0.0
    %1681 = vmatprep.subr.mxu0 0.0
    %1682 = vmatpush2.msra.mxu0 0.0
    %1683 = vmatprep.subr.mxu0 0.0
    %1684 = vmatpush2.msra.mxu0 0.0
    %1685 = vmatprep.subr.mxu0 0.0
    %1686 = vmatpush2.msra.mxu0 0.0
    %1687 = vmatprep.subr.mxu0 0.0
    %1688 = vmatpush2.msra.mxu0 0.0
    %1689 = vmatprep.subr.mxu0 0.0
    %1690 = vmatpush2.msra.mxu0 0.0
    %1691 = vmatprep.subr.mxu0 0.0
    %1692 = vmatpush2.msra.mxu0 0.0
    %1693 = vmatprep.subr.mxu0 0.0
    %1694 = vmatpush2.msra.mxu0 0.0
    %1695 = vmatprep.subr.mxu0 0.0
    %1696 = vmatpush2.msra.mxu0 0.0
    %1697 = vmatprep.subr.mxu0 0.0
    %1698 = vmatpush2.msra.mxu0 0.0
    %1699 = vmatprep.mubr.f32.mxu0 0.0
    %1700 = vmatmul.mubr.f32.gmra.mxu0 %v1611
    %v1701 = vpop.f32.mrf.mxu0
    %v1702 = vadd.f32 %v1633, %v1701
    %v1703 = vpop.f32.mrf.mxu0
    %1704 = vdwg.mxu0
    %1705 = vst [vmem:[#allocation12] sm:$0xff] %v1702
    // Predicated region
    $region54: #{tpu_custom_call.1} parent=1 // pred_check
      _
    $region55: #{tpu_custom_call.1} parent=1 // pred_check_branch
      %1707 = sbr.rel (0) target = $region57
    $region56: #{tpu_custom_call.1} parent=1 // pred_region
      %s1709 = ssub.s32 128, 128
      %1710 = vsyncadd [#allocation6], %s1709
      %s1712 = sshll.u32 [#allocation12], 4
      %s1713 = int_to_ptr.vmem [resolvable:$true] %s1712
      %1715 = dma.vmem_to_hbm [thread:$0]  %s1713, 128, %s9, [#allocation6]
    $region57: #{tpu_custom_call.1} parent=1 // pred_fallthru
      _
    // Predicated region
    $region58: #{tpu_custom_call.1} parent=1 // pred_check
      _
    $region59: #{tpu_custom_call.1} parent=1 // pred_check_branch
      %1717 = sbr.rel (0) target = $region61
    $region60: #{tpu_custom_call.1} parent=1 // pred_region
      %1718 = dma.done [#allocation6], 128
    $region61: #{tpu_custom_call.1} parent=1 // pred_fallthru
      _
    %1719 = vsyncpa [#allocation5], 1
    %1720 = vsyncpa [#allocation8], 1
    %1721 = vsyncpa [#allocation11], 1
    %1722 = vsyncpa [#allocation6], 1

</llo_original>
